<compile_context>
chip_gen: v7x
topology: tpu7x:2x2x1
jax: 0.10.0
libtpu: 0.0.40
codegen_flags: <defaults>
</compile_context>

<pallas_src>
import jax
import jax.numpy as jnp
from jax import lax
from jax.experimental import pallas as pl
from jax.experimental.pallas import tpu as pltpu

EPS = 1e-5
PAD = 8   # activation data rows start at a sublane-aligned offset


# --------------------------------------------------------------------------- #
# Kernel body (shared by the res-conv and identity-skip specializations)
# --------------------------------------------------------------------------- #
def _residual_block_body(xpad_ref, bw1_ref, bw2_ref, twl_ref, temb_ref, pv_ref,
                         rbw_ref, out_ref, hpad_ref,
                         *, N, H, W, Cin, Cout):
    R = N * H                     # rows = (n, h)
    L = W * Cout                  # lanes = (w, c)
    inv_cnt = 1.0 / float(R * W)  # BN sample count = N*H*W
    bf16 = jnp.bfloat16

    # Per-image vertical boundary masks (zero padding along H inside the batch).
    row = lax.broadcasted_iota(jnp.int32, (R, 1), 0)
    h_idx = row % H
    ok_up = h_idx > 0          # tap kh=0 reads image row h-1
    ok_dn = h_idx < (H - 1)    # tap kh=2 reads image row h+1

    def conv3x3(src_ref, bw_ref):
        # src_ref: (R+2*PAD, W*C) f32 slab, data rows [PAD, PAD+R).
        # Three accumulating MXU matmuls on row-offset slices; the kw (width)
        # direction is pre-folded into each (W*C, W*Cout) banded tap weight.
        # Rows PAD-1 / PAD+R may be garbage: ok_up/ok_dn select them away.
        a0 = jnp.where(ok_up, src_ref[pl.ds(PAD - 1, R), :], 0.0)   # row h-1
        a1 = src_ref[pl.ds(PAD, R), :]                              # row h
        a2 = jnp.where(ok_dn, src_ref[pl.ds(PAD + 1, R), :], 0.0)   # row h+1
        acc = jnp.dot(a0.astype(bf16), bw_ref[0],
                      preferred_element_type=jnp.float32)
        acc = acc + jnp.dot(a1.astype(bf16), bw_ref[1],
                            preferred_element_type=jnp.float32)
        acc = acc + jnp.dot(a2.astype(bf16), bw_ref[2],
                            preferred_element_type=jnp.float32)
        return acc                                                  # (R, L) f32

    def lane_group_sum(v):
        # v: (1, L) with lanes laid out as (w, c). Returns, on every lane, the
        # total over its channel group (stride-Cout ring of W lanes), using
        # XLU lane rotations -- co-issues with VPU/MXU work.
        total = v
        if W & (W - 1) == 0:                      # power-of-two W: log2(W) steps
            sh = Cout
            while sh < L:
                total = total + pltpu.roll(total, shift=sh, axis=1)
                sh *= 2
        else:                                     # general W: W-1 steps (tiny)
            rot = v
            for _ in range(W - 1):
                rot = pltpu.roll(rot, shift=Cout, axis=1)
                total = total + rot
        return total

    def batchnorm(h, gamma, beta):
        # Train-mode BN over (N, H, W), biased variance. Two-pass (centered)
        # stats for robustness; the mean subtraction cancels the omitted conv
        # biases exactly.
        mean = lane_group_sum(jnp.sum(h, axis=0, keepdims=True)) * inv_cnt
        d = h - mean
        var = lane_group_sum(jnp.sum(d * d, axis=0, keepdims=True)) * inv_cnt
        return d * (gamma * lax.rsqrt(var + EPS)) + beta

    # Packed per-lane parameter vectors: one (8, L) f32 input.
    g1 = pv_ref[pl.ds(0, 1), :]
    be1 = pv_ref[pl.ds(1, 1), :]
    g2 = pv_ref[pl.ds(2, 1), :]
    be2 = pv_ref[pl.ds(3, 1), :]
    tb = pv_ref[pl.ds(4, 1), :]

    # ---- conv1 -> bn1 -> relu ----
    h = jnp.maximum(batchnorm(conv3x3(xpad_ref, bw1_ref), g1, be1), 0.0)

    # ---- time-embedding projection: tiny (N, D) x (D, L) in-kernel matmul ----
    tproj = jnp.dot(temb_ref[...], twl_ref[...],
                    preferred_element_type=jnp.float32) + tb        # (N, L)

    # ---- stage h + tproj into the row-padded scratch: one sublane-aligned
    #      (H, L) store per image with the per-image broadcast add fused in.
    #      No border zero-fill: conv3x3's masks cover the global boundary.
    for n in range(N):
        hpad_ref[pl.ds(PAD + n * H, H), :] = (
            h[n * H:(n + 1) * H, :] + tproj[n:n + 1, :])

    # ---- conv2 -> bn2 ----
    h2 = batchnorm(conv3x3(hpad_ref, bw2_ref), g2, be2)

    # ---- residual path ----
    xrows = xpad_ref[pl.ds(PAD, R), :]            # (R, W*Cin) f32, aligned load
    if rbw_ref is None:
        res = xrows                               # identity skip, exact f32 add
    else:
        rb = pv_ref[pl.ds(5, 1), :]
        res = jnp.dot(xrows.astype(bf16), rbw_ref[...],
                      preferred_element_type=jnp.float32) + rb

    out_ref[...] = jnp.maximum(h2 + res, 0.0)     # lane-dense (R, 128) store


# --------------------------------------------------------------------------- #
# Parameter plumbing: fold the kw (width) direction of a 3x3 conv into three
# banded tap weights of shape (W*Cin, W*Cout), stacked as (3, W*Cin, W*Cout).
# --------------------------------------------------------------------------- #
def _banded_tap_weights(w_hwio, W):
    _, _, cin, cout = w_hwio.shape
    wi = jnp.arange(W)
    kw = jnp.arange(3)
    sel = (wi[None, :, None] == wi[None, None, :] + kw[:, None, None] - 1)
    sel = sel.astype(jnp.float32)                                   # (3, Win, Wout)
    m = jnp.einsum("kab,hkio->haibo", sel, w_hwio.astype(jnp.float32))
    return m.reshape(3, W * cin, W * cout)


# --------------------------------------------------------------------------- #
# Wrapper: PyTorch-style NCHW in / NCHW out, lane-dense (N*H, W*C) inside.
# --------------------------------------------------------------------------- #
def residual_block_forward(x_nchw, t_emb, params):
    N, Cin, H, W = x_nchw.shape
    Cout = params["g1"].shape[-1]
    R, L = N * H, W * Cout
    f32, bf16 = jnp.float32, jnp.bfloat16

    # Lane-dense activation layout: row = (n, h), lane = (w, c); pad PAD zero
    # rows above/below so data rows start at a sublane-aligned offset.
    x_rows = jnp.transpose(x_nchw.astype(f32), (0, 2, 3, 1)).reshape(R, W * Cin)
    xpad = jnp.pad(x_rows, ((PAD, PAD), (0, 0)))                    # (R+16, W*Cin)

    # One-time parameter plumbing (layout only).
    bw1 = _banded_tap_weights(params["w1"], W).astype(bf16)         # (3, W*Cin, L)
    bw2 = _banded_tap_weights(params["w2"], W).astype(bf16)         # (3, W*Cout, L)
    twl = jnp.tile(params["tw"].astype(f32), (1, W)).astype(bf16)   # (D, L)
    temb = t_emb.astype(bf16)                                       # (N, D)

    tile_l = lambda p: jnp.tile(p.reshape(Cout).astype(f32), (W,))  # (L,)
    has_res_conv = "rw" in params
    pv = jnp.stack(
        [tile_l(params["g1"]), tile_l(params["be1"]),
         tile_l(params["g2"]), tile_l(params["be2"]),
         tile_l(params["tb"]),
         tile_l(params["rb"]) if has_res_conv else jnp.zeros((L,), f32),
         jnp.zeros((L,), f32), jnp.zeros((L,), f32)], axis=0)       # (8, L), 1 DMA

    args = [xpad, bw1, bw2, twl, temb, pv]
    if has_res_conv:
        rbw = jnp.kron(jnp.eye(W, dtype=f32),
                       params["rw"].astype(f32)).astype(bf16)       # (W*Cin, L)
        args.append(rbw)

    def kernel_res(xp, b1, b2, tw, te, pv_, rw, out, hp):
        _residual_block_body(xp, b1, b2, tw, te, pv_, rw, out, hp,
                             N=N, H=H, W=W, Cin=Cin, Cout=Cout)

    def kernel_id(xp, b1, b2, tw, te, pv_, out, hp):
        _residual_block_body(xp, b1, b2, tw, te, pv_, None, out, hp,
                             N=N, H=H, W=W, Cin=Cin, Cout=Cout)

    kernel = kernel_res if has_res_conv else kernel_id

    vmem = pl.BlockSpec(memory_space=pltpu.MemorySpace.VMEM)
    out2d = pl.pallas_call(
        kernel,
        out_shape=jax.ShapeDtypeStruct((R, L), f32),
        in_specs=[vmem] * len(args),
        out_specs=vmem,
        scratch_shapes=[pltpu.VMEM((R + 2 * PAD, L), f32)],   # row-padded h+tproj
        compiler_params=pltpu.CompilerParams(vmem_limit_bytes=32 * 1024 * 1024),
    )(*args)

    return jnp.transpose(out2d.reshape(N, H, W, Cout), (0, 3, 1, 2))  # NCHW


# ----------------------- pure-JAX reference (for checking) -------------------- #
def ref_forward(x_nchw, t_emb, params):
    hp = lax.Precision.HIGHEST
    x = jnp.transpose(x_nchw, (0, 2, 3, 1)).astype(jnp.float32)

    def conv(inp, w, b):
        y = lax.conv_general_dilated(inp, w, (1, 1), "SAME",
                                     dimension_numbers=("NHWC", "HWIO", "NHWC"),
                                     precision=hp)
        return y + b.reshape(1, 1, 1, -1)

    def bn(h, g, b):
        mu = h.mean(axis=(0, 1, 2), keepdims=True)
        var = ((h - mu) ** 2).mean(axis=(0, 1, 2), keepdims=True)
        return (h - mu) / jnp.sqrt(var + EPS) * g.reshape(1, 1, 1, -1) + b.reshape(1, 1, 1, -1)

    h = jnp.maximum(bn(conv(x, params["w1"], params["b1"]),
                       params["g1"], params["be1"]), 0.0)
    t_proj = jnp.dot(t_emb, params["tw"], precision=hp) + params["tb"]
    h = h + t_proj[:, None, None, :]
    h = bn(conv(h, params["w2"], params["b2"]), params["g2"], params["be2"])
    if "rw" in params:
        res = jnp.einsum("nhwc,cd->nhwd", x, params["rw"],
                         precision=hp) + params["rb"].reshape(1, 1, 1, -1)
    else:
        res = x
    return jnp.transpose(jnp.maximum(h + res, 0.0), (0, 3, 1, 2))


# ----------------------------- deterministic params --------------------------- #
def init_params(key, in_channels, out_channels, time_emb_dim):
    ks = jax.random.split(key, 12)
    rnd = lambda k, s, sc: jax.random.normal(k, s, jnp.float32) * sc
    p = {
        "w1": rnd(ks[0], (3, 3, in_channels, out_channels), 0.2),   # HWIO
        "b1": rnd(ks[1], (1, out_channels), 0.1),   # cancelled by train-mode BN
        "w2": rnd(ks[2], (3, 3, out_channels, out_channels), 0.2),
        "b2": rnd(ks[3], (1, out_channels), 0.1),
        "g1": 1.0 + rnd(ks[4], (1, out_channels), 0.1),             # BN affine
        "be1": rnd(ks[5], (1, out_channels), 0.1),
        "g2": 1.0 + rnd(ks[6], (1, out_channels), 0.1),
        "be2": rnd(ks[7], (1, out_channels), 0.1),
        "tw": rnd(ks[8], (time_emb_dim, out_channels), 0.2),        # Linear (D, Cout)
        "tb": rnd(ks[9], (1, out_channels), 0.1),
    }
    if in_channels != out_channels:                                 # 1x1 res_conv
        p["rw"] = rnd(ks[10], (in_channels, out_channels), 0.2)
        p["rb"] = rnd(ks[11], (1, out_channels), 0.1)
    return p


def _check(N, Cin, Cout, H, W, D, key):
    kx, kt, kp = jax.random.split(key, 3)
    x = jax.random.normal(kx, (N, Cin, H, W), jnp.float32)          # NCHW
    t_emb = jax.random.normal(kt, (N, D), jnp.float32)
    params = init_params(kp, Cin, Cout, D)

    out = jax.block_until_ready(residual_block_forward(x, t_emb, params))
    ref = jax.block_until_ready(ref_forward(x, t_emb, params))
    assert out.shape == (N, Cout, H, W), out.shape
    diff = jnp.abs(out - ref)
    # bf16 MXU operands (f32 accumulation) -> allow bf16-level deviation.
    assert float(jnp.max(diff)) < 5e-2, f"max diff vs reference: {float(jnp.max(diff))}"
    assert float(jnp.mean(diff)) < 1e-2, f"mean diff vs reference: {float(jnp.mean(diff))}"


if __name__ == "__main__":
    key = jax.random.PRNGKey(0)
    # Cin != Cout: exercises the banded 1x1 res_conv path.
    _check(N=2, Cin=4, Cout=8, H=16, W=16, D=32, key=key)
    # Cin == Cout: exercises the specialized identity-skip path (no res matmul).
    _check(N=2, Cin=8, Cout=8, H=16, W=16, D=32, key=jax.random.fold_in(key, 1))
    print("KERNEL_OK")
</pallas_src>

<mosaic_0001>
module attributes {stable_mosaic.version = 11 : i64} {
  func.func @kernel_res(%arg0: memref<48x64xf32, #tpu.memory_space<vmem>>, %arg1: memref<3x64x128xbf16, #tpu.memory_space<vmem>>, %arg2: memref<3x128x128xbf16, #tpu.memory_space<vmem>>, %arg3: memref<32x128xbf16, #tpu.memory_space<vmem>>, %arg4: memref<2x32xbf16, #tpu.memory_space<vmem>>, %arg5: memref<8x128xf32, #tpu.memory_space<vmem>>, %arg6: memref<64x128xbf16, #tpu.memory_space<vmem>>, %arg7: memref<32x128xf32, #tpu.memory_space<vmem>>, %arg8: memref<48x128xf32, #tpu.memory_space<vmem>>) attributes {dimension_semantics = [], scalar_prefetch = 0 : i64, scratch_operands = 1 : i64, tpu.core_type = #tpu.core_type<tc>} {
    %0 = tpu.iota {dimensions = array<i32: 0>} : vector<32x1xi32>
    %c16_i32 = arith.constant 16 : i32
    %c0_i32 = arith.constant 0 : i32
    %1 = arith.cmpi eq, %c16_i32, %c0_i32 : i32
    %c1_i32 = arith.constant 1 : i32
    %2 = arith.select %1, %c1_i32, %c16_i32 : i32
    %3 = vector.broadcast %2 : i32 to vector<32x1xi32>
    %4 = arith.remsi %0, %3 : vector<32x1xi32>
    %c0_i32_0 = arith.constant 0 : i32
    %5 = vector.broadcast %c0_i32_0 : i32 to vector<32x1xi32>
    %6 = arith.cmpi ne, %4, %5 : vector<32x1xi32>
    %c0_i32_1 = arith.constant 0 : i32
    %7 = vector.broadcast %c0_i32_1 : i32 to vector<32x1xi32>
    %8 = arith.cmpi slt, %4, %7 : vector<32x1xi32>
    %c0_i32_2 = arith.constant 0 : i32
    %9 = arith.cmpi slt, %2, %c0_i32_2 : i32
    %10 = vector.broadcast %9 : i1 to vector<32x1xi1>
    %11 = vector.broadcast %10 : vector<32x1xi1> to vector<32x1xi1>
    %12 = arith.xori %8, %11 : vector<32x1xi1>
    %13 = arith.andi %12, %6 : vector<32x1xi1>
    %14 = vector.broadcast %2 : i32 to vector<32x1xi32>
    %15 = arith.addi %4, %14 : vector<32x1xi32>
    %16 = arith.select %13, %15, %4 : vector<32x1xi1>, vector<32x1xi32>
    %c0_i32_3 = arith.constant 0 : i32
    %17 = vector.broadcast %c0_i32_3 : i32 to vector<32x1xi32>
    %18 = arith.cmpi sgt, %16, %17 : vector<32x1xi32>
    %c15_i32 = arith.constant 15 : i32
    %19 = vector.broadcast %c15_i32 : i32 to vector<32x1xi32>
    %20 = arith.cmpi slt, %16, %19 : vector<32x1xi32>
    %c0 = arith.constant 0 : index
    %c0_4 = arith.constant 0 : index
    %21 = vector.load %arg5[%c0, %c0_4] : memref<8x128xf32, #tpu.memory_space<vmem>>, vector<1x128xf32>
    %c1 = arith.constant 1 : index
    %c0_5 = arith.constant 0 : index
    %22 = vector.load %arg5[%c1, %c0_5] : memref<8x128xf32, #tpu.memory_space<vmem>>, vector<1x128xf32>
    %c2 = arith.constant 2 : index
    %c0_6 = arith.constant 0 : index
    %23 = vector.load %arg5[%c2, %c0_6] : memref<8x128xf32, #tpu.memory_space<vmem>>, vector<1x128xf32>
    %c3 = arith.constant 3 : index
    %c0_7 = arith.constant 0 : index
    %24 = vector.load %arg5[%c3, %c0_7] : memref<8x128xf32, #tpu.memory_space<vmem>>, vector<1x128xf32>
    %c4 = arith.constant 4 : index
    %c0_8 = arith.constant 0 : index
    %25 = vector.load %arg5[%c4, %c0_8] : memref<8x128xf32, #tpu.memory_space<vmem>>, vector<1x128xf32>
    %c7 = arith.constant 7 : index
    %c0_9 = arith.constant 0 : index
    %26 = vector.load %arg0[%c7, %c0_9] : memref<48x64xf32, #tpu.memory_space<vmem>>, vector<32x64xf32>
    %cst = arith.constant 0.000000e+00 : f32
    %27 = vector.shape_cast %18 : vector<32x1xi1> to vector<32x1xi1>
    %28 = vector.broadcast %27 : vector<32x1xi1> to vector<32x64xi1>
    %29 = vector.broadcast %cst : f32 to vector<32x64xf32>
    %30 = arith.select %28, %26, %29 : vector<32x64xi1>, vector<32x64xf32>
    %c8 = arith.constant 8 : index
    %c0_10 = arith.constant 0 : index
    %31 = vector.load %arg0[%c8, %c0_10] : memref<48x64xf32, #tpu.memory_space<vmem>>, vector<32x64xf32>
    %c9 = arith.constant 9 : index
    %c0_11 = arith.constant 0 : index
    %32 = vector.load %arg0[%c9, %c0_11] : memref<48x64xf32, #tpu.memory_space<vmem>>, vector<32x64xf32>
    %cst_12 = arith.constant 0.000000e+00 : f32
    %33 = vector.shape_cast %20 : vector<32x1xi1> to vector<32x1xi1>
    %34 = vector.broadcast %33 : vector<32x1xi1> to vector<32x64xi1>
    %35 = vector.broadcast %cst_12 : f32 to vector<32x64xf32>
    %36 = arith.select %34, %32, %35 : vector<32x64xi1>, vector<32x64xf32>
    %37 = arith.truncf %30 : vector<32x64xf32> to vector<32x64xbf16>
    %c0_13 = arith.constant 0 : index
    %c0_14 = arith.constant 0 : index
    %c0_15 = arith.constant 0 : index
    %38 = vector.load %arg1[%c0_13, %c0_14, %c0_15] : memref<3x64x128xbf16, #tpu.memory_space<vmem>>, vector<1x64x128xbf16>
    %39 = vector.shape_cast %38 : vector<1x64x128xbf16> to vector<64x128xbf16>
    %cst_16 = arith.constant dense<0.000000e+00> : vector<32x128xf32>
    %40 = tpu.matmul %37, %39, %cst_16 {dimension_numbers = #tpu.dot_dimension_numbers<[1], [0], [0], [1], [0, 0, 1, 1], [], []>} : vector<32x64xbf16>, vector<64x128xbf16>, vector<32x128xf32> -> vector<32x128xf32>
    %41 = arith.truncf %31 : vector<32x64xf32> to vector<32x64xbf16>
    %c1_17 = arith.constant 1 : index
    %c0_18 = arith.constant 0 : index
    %c0_19 = arith.constant 0 : index
    %42 = vector.load %arg1[%c1_17, %c0_18, %c0_19] : memref<3x64x128xbf16, #tpu.memory_space<vmem>>, vector<1x64x128xbf16>
    %43 = vector.shape_cast %42 : vector<1x64x128xbf16> to vector<64x128xbf16>
    %cst_20 = arith.constant dense<0.000000e+00> : vector<32x128xf32>
    %44 = tpu.matmul %41, %43, %cst_20 {dimension_numbers = #tpu.dot_dimension_numbers<[1], [0], [0], [1], [0, 0, 1, 1], [], []>} : vector<32x64xbf16>, vector<64x128xbf16>, vector<32x128xf32> -> vector<32x128xf32>
    %45 = arith.addf %40, %44 : vector<32x128xf32>
    %46 = arith.truncf %36 : vector<32x64xf32> to vector<32x64xbf16>
    %c2_21 = arith.constant 2 : index
    %c0_22 = arith.constant 0 : index
    %c0_23 = arith.constant 0 : index
    %47 = vector.load %arg1[%c2_21, %c0_22, %c0_23] : memref<3x64x128xbf16, #tpu.memory_space<vmem>>, vector<1x64x128xbf16>
    %48 = vector.shape_cast %47 : vector<1x64x128xbf16> to vector<64x128xbf16>
    %cst_24 = arith.constant dense<0.000000e+00> : vector<32x128xf32>
    %49 = tpu.matmul %46, %48, %cst_24 {dimension_numbers = #tpu.dot_dimension_numbers<[1], [0], [0], [1], [0, 0, 1, 1], [], []>} : vector<32x64xbf16>, vector<64x128xbf16>, vector<32x128xf32> -> vector<32x128xf32>
    %50 = arith.addf %45, %49 : vector<32x128xf32>
    %cst_25 = arith.constant dense<0.000000e+00> : vector<128xf32>
    %51 = vector.multi_reduction <add>, %50, %cst_25 [0] : vector<32x128xf32> to vector<128xf32>
    %52 = vector.shape_cast %51 : vector<128xf32> to vector<1x128xf32>
    %c8_i32 = arith.constant 8 : i32
    %53 = tpu.dynamic_rotate %52 by %c8_i32 dim 1 : vector<1x128xf32>, i32 -> vector<1x128xf32>
    %54 = arith.addf %52, %53 : vector<1x128xf32>
    %c16_i32_26 = arith.constant 16 : i32
    %55 = tpu.dynamic_rotate %54 by %c16_i32_26 dim 1 : vector<1x128xf32>, i32 -> vector<1x128xf32>
    %56 = arith.addf %54, %55 : vector<1x128xf32>
    %c32_i32 = arith.constant 32 : i32
    %57 = tpu.dynamic_rotate %56 by %c32_i32 dim 1 : vector<1x128xf32>, i32 -> vector<1x128xf32>
    %58 = arith.addf %56, %57 : vector<1x128xf32>
    %c64_i32 = arith.constant 64 : i32
    %59 = tpu.dynamic_rotate %58 by %c64_i32 dim 1 : vector<1x128xf32>, i32 -> vector<1x128xf32>
    %60 = arith.addf %58, %59 : vector<1x128xf32>
    %cst_27 = arith.constant 0.001953125 : f32
    %61 = vector.broadcast %cst_27 : f32 to vector<1x128xf32>
    %62 = arith.mulf %60, %61 : vector<1x128xf32>
    %63 = vector.broadcast %62 : vector<1x128xf32> to vector<32x128xf32>
    %64 = arith.subf %50, %63 : vector<32x128xf32>
    %65 = arith.mulf %64, %64 : vector<32x128xf32>
    %cst_28 = arith.constant dense<0.000000e+00> : vector<128xf32>
    %66 = vector.multi_reduction <add>, %65, %cst_28 [0] : vector<32x128xf32> to vector<128xf32>
    %67 = vector.shape_cast %66 : vector<128xf32> to vector<1x128xf32>
    %c8_i32_29 = arith.constant 8 : i32
    %68 = tpu.dynamic_rotate %67 by %c8_i32_29 dim 1 : vector<1x128xf32>, i32 -> vector<1x128xf32>
    %69 = arith.addf %67, %68 : vector<1x128xf32>
    %c16_i32_30 = arith.constant 16 : i32
    %70 = tpu.dynamic_rotate %69 by %c16_i32_30 dim 1 : vector<1x128xf32>, i32 -> vector<1x128xf32>
    %71 = arith.addf %69, %70 : vector<1x128xf32>
    %c32_i32_31 = arith.constant 32 : i32
    %72 = tpu.dynamic_rotate %71 by %c32_i32_31 dim 1 : vector<1x128xf32>, i32 -> vector<1x128xf32>
    %73 = arith.addf %71, %72 : vector<1x128xf32>
    %c64_i32_32 = arith.constant 64 : i32
    %74 = tpu.dynamic_rotate %73 by %c64_i32_32 dim 1 : vector<1x128xf32>, i32 -> vector<1x128xf32>
    %75 = arith.addf %73, %74 : vector<1x128xf32>
    %cst_33 = arith.constant 0.001953125 : f32
    %76 = vector.broadcast %cst_33 : f32 to vector<1x128xf32>
    %77 = arith.mulf %75, %76 : vector<1x128xf32>
    %cst_34 = arith.constant 9.99999974E-6 : f32
    %78 = vector.broadcast %cst_34 : f32 to vector<1x128xf32>
    %79 = arith.addf %77, %78 : vector<1x128xf32>
    %80 = math.rsqrt %79 : vector<1x128xf32>
    %81 = arith.mulf %21, %80 : vector<1x128xf32>
    %82 = vector.broadcast %81 : vector<1x128xf32> to vector<32x128xf32>
    %83 = arith.mulf %64, %82 : vector<32x128xf32>
    %84 = vector.broadcast %22 : vector<1x128xf32> to vector<32x128xf32>
    %85 = arith.addf %83, %84 : vector<32x128xf32>
    %cst_35 = arith.constant 0.000000e+00 : f32
    %86 = vector.broadcast %cst_35 : f32 to vector<32x128xf32>
    %87 = arith.maximumf %85, %86 : vector<32x128xf32>
    %c0_36 = arith.constant 0 : index
    %c0_37 = arith.constant 0 : index
    %88 = vector.load %arg4[%c0_36, %c0_37] : memref<2x32xbf16, #tpu.memory_space<vmem>>, vector<2x32xbf16>
    %c0_38 = arith.constant 0 : index
    %c0_39 = arith.constant 0 : index
    %89 = vector.load %arg3[%c0_38, %c0_39] : memref<32x128xbf16, #tpu.memory_space<vmem>>, vector<32x128xbf16>
    %cst_40 = arith.constant dense<0.000000e+00> : vector<2x128xf32>
    %90 = tpu.matmul %88, %89, %cst_40 {dimension_numbers = #tpu.dot_dimension_numbers<[1], [0], [0], [1], [0, 0, 1, 1], [], []>} : vector<2x32xbf16>, vector<32x128xbf16>, vector<2x128xf32> -> vector<2x128xf32>
    %91 = vector.broadcast %25 : vector<1x128xf32> to vector<2x128xf32>
    %92 = arith.addf %90, %91 : vector<2x128xf32>
    %93 = vector.extract_strided_slice %87 {offsets = [0, 0], sizes = [16, 128], strides = [1, 1]} : vector<32x128xf32> to vector<16x128xf32>
    %94 = vector.extract_strided_slice %92 {offsets = [0, 0], sizes = [1, 128], strides = [1, 1]} : vector<2x128xf32> to vector<1x128xf32>
    %95 = vector.broadcast %94 : vector<1x128xf32> to vector<16x128xf32>
    %96 = arith.addf %93, %95 : vector<16x128xf32>
    %c8_41 = arith.constant 8 : index
    %c0_42 = arith.constant 0 : index
    %97 = vector.load %arg8[%c8_41, %c0_42] : memref<48x128xf32, #tpu.memory_space<vmem>>, vector<16x128xf32>
    tpu.vector_store %arg8[%c8_41, %c0_42], %96 {strides = array<i32>} : memref<48x128xf32, #tpu.memory_space<vmem>>, vector<16x128xf32>,
    %98 = vector.extract_strided_slice %87 {offsets = [16, 0], sizes = [16, 128], strides = [1, 1]} : vector<32x128xf32> to vector<16x128xf32>
    %99 = vector.extract_strided_slice %92 {offsets = [1, 0], sizes = [1, 128], strides = [1, 1]} : vector<2x128xf32> to vector<1x128xf32>
    %100 = vector.broadcast %99 : vector<1x128xf32> to vector<16x128xf32>
    %101 = arith.addf %98, %100 : vector<16x128xf32>
    %c24 = arith.constant 24 : index
    %c0_43 = arith.constant 0 : index
    %102 = vector.load %arg8[%c24, %c0_43] : memref<48x128xf32, #tpu.memory_space<vmem>>, vector<16x128xf32>
    tpu.vector_store %arg8[%c24, %c0_43], %101 {strides = array<i32>} : memref<48x128xf32, #tpu.memory_space<vmem>>, vector<16x128xf32>,
    %c7_44 = arith.constant 7 : index
    %c0_45 = arith.constant 0 : index
    %103 = vector.load %arg8[%c7_44, %c0_45] : memref<48x128xf32, #tpu.memory_space<vmem>>, vector<32x128xf32>
    %cst_46 = arith.constant 0.000000e+00 : f32
    %104 = vector.shape_cast %18 : vector<32x1xi1> to vector<32x1xi1>
    %105 = vector.broadcast %104 : vector<32x1xi1> to vector<32x128xi1>
    %106 = vector.broadcast %cst_46 : f32 to vector<32x128xf32>
    %107 = arith.select %105, %103, %106 : vector<32x128xi1>, vector<32x128xf32>
    %c8_47 = arith.constant 8 : index
    %c0_48 = arith.constant 0 : index
    %108 = vector.load %arg8[%c8_47, %c0_48] : memref<48x128xf32, #tpu.memory_space<vmem>>, vector<32x128xf32>
    %c9_49 = arith.constant 9 : index
    %c0_50 = arith.constant 0 : index
    %109 = vector.load %arg8[%c9_49, %c0_50] : memref<48x128xf32, #tpu.memory_space<vmem>>, vector<32x128xf32>
    %cst_51 = arith.constant 0.000000e+00 : f32
    %110 = vector.shape_cast %20 : vector<32x1xi1> to vector<32x1xi1>
    %111 = vector.broadcast %110 : vector<32x1xi1> to vector<32x128xi1>
    %112 = vector.broadcast %cst_51 : f32 to vector<32x128xf32>
    %113 = arith.select %111, %109, %112 : vector<32x128xi1>, vector<32x128xf32>
    %114 = arith.truncf %107 : vector<32x128xf32> to vector<32x128xbf16>
    %c0_52 = arith.constant 0 : index
    %c0_53 = arith.constant 0 : index
    %c0_54 = arith.constant 0 : index
    %115 = vector.load %arg2[%c0_52, %c0_53, %c0_54] : memref<3x128x128xbf16, #tpu.memory_space<vmem>>, vector<1x128x128xbf16>
    %116 = vector.shape_cast %115 : vector<1x128x128xbf16> to vector<128x128xbf16>
    %cst_55 = arith.constant dense<0.000000e+00> : vector<32x128xf32>
    %117 = tpu.matmul %114, %116, %cst_55 {dimension_numbers = #tpu.dot_dimension_numbers<[1], [0], [0], [1], [0, 0, 1, 1], [], []>} : vector<32x128xbf16>, vector<128x128xbf16>, vector<32x128xf32> -> vector<32x128xf32>
    %118 = arith.truncf %108 : vector<32x128xf32> to vector<32x128xbf16>
    %c1_56 = arith.constant 1 : index
    %c0_57 = arith.constant 0 : index
    %c0_58 = arith.constant 0 : index
    %119 = vector.load %arg2[%c1_56, %c0_57, %c0_58] : memref<3x128x128xbf16, #tpu.memory_space<vmem>>, vector<1x128x128xbf16>
    %120 = vector.shape_cast %119 : vector<1x128x128xbf16> to vector<128x128xbf16>
    %cst_59 = arith.constant dense<0.000000e+00> : vector<32x128xf32>
    %121 = tpu.matmul %118, %120, %cst_59 {dimension_numbers = #tpu.dot_dimension_numbers<[1], [0], [0], [1], [0, 0, 1, 1], [], []>} : vector<32x128xbf16>, vector<128x128xbf16>, vector<32x128xf32> -> vector<32x128xf32>
    %122 = arith.addf %117, %121 : vector<32x128xf32>
    %123 = arith.truncf %113 : vector<32x128xf32> to vector<32x128xbf16>
    %c2_60 = arith.constant 2 : index
    %c0_61 = arith.constant 0 : index
    %c0_62 = arith.constant 0 : index
    %124 = vector.load %arg2[%c2_60, %c0_61, %c0_62] : memref<3x128x128xbf16, #tpu.memory_space<vmem>>, vector<1x128x128xbf16>
    %125 = vector.shape_cast %124 : vector<1x128x128xbf16> to vector<128x128xbf16>
    %cst_63 = arith.constant dense<0.000000e+00> : vector<32x128xf32>
    %126 = tpu.matmul %123, %125, %cst_63 {dimension_numbers = #tpu.dot_dimension_numbers<[1], [0], [0], [1], [0, 0, 1, 1], [], []>} : vector<32x128xbf16>, vector<128x128xbf16>, vector<32x128xf32> -> vector<32x128xf32>
    %127 = arith.addf %122, %126 : vector<32x128xf32>
    %cst_64 = arith.constant dense<0.000000e+00> : vector<128xf32>
    %128 = vector.multi_reduction <add>, %127, %cst_64 [0] : vector<32x128xf32> to vector<128xf32>
    %129 = vector.shape_cast %128 : vector<128xf32> to vector<1x128xf32>
    %c8_i32_65 = arith.constant 8 : i32
    %130 = tpu.dynamic_rotate %129 by %c8_i32_65 dim 1 : vector<1x128xf32>, i32 -> vector<1x128xf32>
    %131 = arith.addf %129, %130 : vector<1x128xf32>
    %c16_i32_66 = arith.constant 16 : i32
    %132 = tpu.dynamic_rotate %131 by %c16_i32_66 dim 1 : vector<1x128xf32>, i32 -> vector<1x128xf32>
    %133 = arith.addf %131, %132 : vector<1x128xf32>
    %c32_i32_67 = arith.constant 32 : i32
    %134 = tpu.dynamic_rotate %133 by %c32_i32_67 dim 1 : vector<1x128xf32>, i32 -> vector<1x128xf32>
    %135 = arith.addf %133, %134 : vector<1x128xf32>
    %c64_i32_68 = arith.constant 64 : i32
    %136 = tpu.dynamic_rotate %135 by %c64_i32_68 dim 1 : vector<1x128xf32>, i32 -> vector<1x128xf32>
    %137 = arith.addf %135, %136 : vector<1x128xf32>
    %cst_69 = arith.constant 0.001953125 : f32
    %138 = vector.broadcast %cst_69 : f32 to vector<1x128xf32>
    %139 = arith.mulf %137, %138 : vector<1x128xf32>
    %140 = vector.broadcast %139 : vector<1x128xf32> to vector<32x128xf32>
    %141 = arith.subf %127, %140 : vector<32x128xf32>
    %142 = arith.mulf %141, %141 : vector<32x128xf32>
    %cst_70 = arith.constant dense<0.000000e+00> : vector<128xf32>
    %143 = vector.multi_reduction <add>, %142, %cst_70 [0] : vector<32x128xf32> to vector<128xf32>
    %144 = vector.shape_cast %143 : vector<128xf32> to vector<1x128xf32>
    %c8_i32_71 = arith.constant 8 : i32
    %145 = tpu.dynamic_rotate %144 by %c8_i32_71 dim 1 : vector<1x128xf32>, i32 -> vector<1x128xf32>
    %146 = arith.addf %144, %145 : vector<1x128xf32>
    %c16_i32_72 = arith.constant 16 : i32
    %147 = tpu.dynamic_rotate %146 by %c16_i32_72 dim 1 : vector<1x128xf32>, i32 -> vector<1x128xf32>
    %148 = arith.addf %146, %147 : vector<1x128xf32>
    %c32_i32_73 = arith.constant 32 : i32
    %149 = tpu.dynamic_rotate %148 by %c32_i32_73 dim 1 : vector<1x128xf32>, i32 -> vector<1x128xf32>
    %150 = arith.addf %148, %149 : vector<1x128xf32>
    %c64_i32_74 = arith.constant 64 : i32
    %151 = tpu.dynamic_rotate %150 by %c64_i32_74 dim 1 : vector<1x128xf32>, i32 -> vector<1x128xf32>
    %152 = arith.addf %150, %151 : vector<1x128xf32>
    %cst_75 = arith.constant 0.001953125 : f32
    %153 = vector.broadcast %cst_75 : f32 to vector<1x128xf32>
    %154 = arith.mulf %152, %153 : vector<1x128xf32>
    %cst_76 = arith.constant 9.99999974E-6 : f32
    %155 = vector.broadcast %cst_76 : f32 to vector<1x128xf32>
    %156 = arith.addf %154, %155 : vector<1x128xf32>
    %157 = math.rsqrt %156 : vector<1x128xf32>
    %158 = arith.mulf %23, %157 : vector<1x128xf32>
    %159 = vector.broadcast %158 : vector<1x128xf32> to vector<32x128xf32>
    %160 = arith.mulf %141, %159 : vector<32x128xf32>
    %161 = vector.broadcast %24 : vector<1x128xf32> to vector<32x128xf32>
    %162 = arith.addf %160, %161 : vector<32x128xf32>
    %c8_77 = arith.constant 8 : index
    %c0_78 = arith.constant 0 : index
    %163 = vector.load %arg0[%c8_77, %c0_78] : memref<48x64xf32, #tpu.memory_space<vmem>>, vector<32x64xf32>
    %c5 = arith.constant 5 : index
    %c0_79 = arith.constant 0 : index
    %164 = vector.load %arg5[%c5, %c0_79] : memref<8x128xf32, #tpu.memory_space<vmem>>, vector<1x128xf32>
    %165 = arith.truncf %163 : vector<32x64xf32> to vector<32x64xbf16>
    %c0_80 = arith.constant 0 : index
    %c0_81 = arith.constant 0 : index
    %166 = vector.load %arg6[%c0_80, %c0_81] : memref<64x128xbf16, #tpu.memory_space<vmem>>, vector<64x128xbf16>
    %cst_82 = arith.constant dense<0.000000e+00> : vector<32x128xf32>
    %167 = tpu.matmul %165, %166, %cst_82 {dimension_numbers = #tpu.dot_dimension_numbers<[1], [0], [0], [1], [0, 0, 1, 1], [], []>} : vector<32x64xbf16>, vector<64x128xbf16>, vector<32x128xf32> -> vector<32x128xf32>
    %168 = vector.broadcast %164 : vector<1x128xf32> to vector<32x128xf32>
    %169 = arith.addf %167, %168 : vector<32x128xf32>
    %170 = arith.addf %162, %169 : vector<32x128xf32>
    %cst_83 = arith.constant 0.000000e+00 : f32
    %171 = vector.broadcast %cst_83 : f32 to vector<32x128xf32>
    %172 = arith.maximumf %170, %171 : vector<32x128xf32>
    %c0_84 = arith.constant 0 : index
    %c0_85 = arith.constant 0 : index
    %173 = vector.load %arg7[%c0_84, %c0_85] : memref<32x128xf32, #tpu.memory_space<vmem>>, vector<32x128xf32>
    tpu.vector_store %arg7[%c0_84, %c0_85], %172 {strides = array<i32>} : memref<32x128xf32, #tpu.memory_space<vmem>>, vector<32x128xf32>,
    return
  }
}

</mosaic_0001>

<llo_original>
// kernel: tpu_custom_call.1
$region0: #{tpu_custom_call.1}
  #allocation0 [shape = 'u32[]', space=smem, size = 0x4, offset = 0x4, fixed_abs, tag = 'smem constant byte address 0x4 - core index']
  #allocation1 [shape = 'u32[144,128]{1,0:T(1,128)}', space=vmem, size = 0x12000, scoped, tag = 'internal scratch']
  #allocation2 [shape = 'f32[48,128]{1,0:T(8,128)}', space=vmem, size = 0x6000, scoped, tag = 'scratch operand']
  %s0 = inlined_call_operand.hbm [shape: f32[48,64], index: 0, kind: input, shape index: {}]
  %s1 = inlined_call_operand.hbm [shape: bf16[3,64,128], index: 1, kind: input, shape index: {}]
  %s2 = inlined_call_operand.hbm [shape: bf16[3,128,128], index: 2, kind: input, shape index: {}]
  %s3 = inlined_call_operand.hbm [shape: bf16[32,128], index: 3, kind: input, shape index: {}]
  %s4 = inlined_call_operand.vmem [shape: bf16[2,32], index: 4, kind: input, shape index: {}]
  %s5 = inlined_call_operand.vmem [shape: f32[8,128], index: 5, kind: input, shape index: {}]
  %s6 = inlined_call_operand.hbm [shape: bf16[64,128], index: 6, kind: input, shape index: {}]
  %s7 = inlined_call_operand.hbm [shape: f32[32,128], index: 7, kind: output, shape index: {}]
  %s8 = sld [smem:[#allocation0]]
  $region58: #{tpu_custom_call.1} parent=0
    _
  %s10 = ssub.s32 1, %s8
  %s11 = scalar_select 0, %s10, %s8
  $region1: #{tpu_custom_call.1} parent=0
    #allocation3 [shape = 'u8[24576]{0}', space=vmem, size = 0x6000, scoped, tag = 'input window, operand 0, single buffered']
    #allocation4 [shape = 's32[1]{0}', space=sflag, size = 0x4, scoped, tag = 'scoped memory for tpu_custom_call.1']
    #allocation5 [shape = 's32[1]{0}', space=sflag, size = 0x4, scoped, tag = 'scoped memory for tpu_custom_call.1']
    #allocation6 [shape = 'u8[49152]{0}', space=vmem, size = 0xc000, scoped, tag = 'input window, operand 1, single buffered']
    #allocation7 [shape = 's32[1]{0}', space=sflag, size = 0x4, scoped, tag = 'scoped memory for tpu_custom_call.1']
    #allocation8 [shape = 'u8[98304]{0}', space=vmem, size = 0x18000, scoped, tag = 'input window, operand 2, single buffered']
    #allocation9 [shape = 'u8[8192]{0}', space=vmem, size = 0x2000, scoped, tag = 'input window, operand 3, single buffered']
    #allocation10 [shape = 's32[1]{0}', space=sflag, size = 0x4, scoped, tag = 'scoped memory for tpu_custom_call.1']
    #allocation11 [shape = 'u8[16384]{0}', space=vmem, size = 0x4000, scoped, tag = 'input window, operand 6, single buffered']
    #allocation12 [shape = 'u8[16384]{0}', space=vmem, size = 0x4000, scoped, tag = 'output window, operand 0, single buffered']
    %12 = vsyncpa [#allocation4], 0
    %13 = vsyncpa [#allocation7], 0
    %14 = vsyncpa [#allocation10], 0
    %15 = vsyncpa [#allocation5], 0
    // Predicated region
    $region2: #{tpu_custom_call.1} parent=1 // pred_check
      _
    $region3: #{tpu_custom_call.1} parent=1 // pred_check_branch
      %17 = sbr.rel (0) target = $region5
    $region4: #{tpu_custom_call.1} parent=1 // pred_region
      %s19 = ssub.s32 768, 768
      %20 = vsyncadd [#allocation4], %s19
      %s21 = sshll.u32 [#allocation3], 4
      %s22 = int_to_ptr.vmem [resolvable:$true] %s21
      %27 = dma.hbm_to_vmem [thread:$0]  %s0, 768, %s22, [#allocation4], 128, 128, 8
    $region5: #{tpu_custom_call.1} parent=1 // pred_fallthru
      _
    // Predicated region
    $region6: #{tpu_custom_call.1} parent=1 // pred_check
      _
    $region7: #{tpu_custom_call.1} parent=1 // pred_check_branch
      %29 = sbr.rel (0) target = $region9
    $region8: #{tpu_custom_call.1} parent=1 // pred_region
      %s31 = ssub.s32 1536, 1536
      %32 = vsyncadd [#allocation7], %s31
      %s33 = sshll.u32 [#allocation6], 4
      %s34 = int_to_ptr.vmem [resolvable:$true] %s33
      %39 = dma.hbm_to_vmem [thread:$0]  %s1, 1536, %s34, [#allocation7], 64, 64, 4
    $region9: #{tpu_custom_call.1} parent=1 // pred_fallthru
      _
    // Predicated region
    $region10: #{tpu_custom_call.1} parent=1 // pred_check
      _
    $region11: #{tpu_custom_call.1} parent=1 // pred_check_branch
      %41 = sbr.rel (0) target = $region13
    $region12: #{tpu_custom_call.1} parent=1 // pred_region
      %s43 = ssub.s32 3072, 3072
      %44 = vsyncadd [#allocation7], %s43
      %s45 = sshll.u32 [#allocation8], 4
      %s46 = int_to_ptr.vmem [resolvable:$true] %s45
      %51 = dma.hbm_to_vmem [thread:$0]  %s2, 3072, %s46, [#allocation7], 64, 64, 4
    $region13: #{tpu_custom_call.1} parent=1 // pred_fallthru
      _
    // Predicated region
    $region14: #{tpu_custom_call.1} parent=1 // pred_check
      _
    $region15: #{tpu_custom_call.1} parent=1 // pred_check_branch
      %53 = sbr.rel (0) target = $region17
    $region16: #{tpu_custom_call.1} parent=1 // pred_region
      %s55 = ssub.s32 256, 256
      %56 = vsyncadd [#allocation10], %s55
      %s57 = sshll.u32 [#allocation9], 4
      %s58 = int_to_ptr.vmem [resolvable:$true] %s57
      %63 = dma.hbm_to_vmem [thread:$0]  %s3, 256, %s58, [#allocation10], 64, 64, 4
    $region17: #{tpu_custom_call.1} parent=1 // pred_fallthru
      _
    // Predicated region
    $region18: #{tpu_custom_call.1} parent=1 // pred_check
      _
    $region19: #{tpu_custom_call.1} parent=1 // pred_check_branch
      %65 = sbr.rel (0) target = $region21
    $region20: #{tpu_custom_call.1} parent=1 // pred_region
      _
    $region21: #{tpu_custom_call.1} parent=1 // pred_fallthru
      _
    // Predicated region
    $region22: #{tpu_custom_call.1} parent=1 // pred_check
      _
    $region23: #{tpu_custom_call.1} parent=1 // pred_check_branch
      %67 = sbr.rel (0) target = $region25
    $region24: #{tpu_custom_call.1} parent=1 // pred_region
      _
    $region25: #{tpu_custom_call.1} parent=1 // pred_fallthru
      _
    // Predicated region
    $region26: #{tpu_custom_call.1} parent=1 // pred_check
      _
    $region27: #{tpu_custom_call.1} parent=1 // pred_check_branch
      %69 = sbr.rel (0) target = $region29
    $region28: #{tpu_custom_call.1} parent=1 // pred_region
      %s71 = ssub.s32 512, 512
      %72 = vsyncadd [#allocation10], %s71
      %s73 = sshll.u32 [#allocation11], 4
      %s74 = int_to_ptr.vmem [resolvable:$true] %s73
      %79 = dma.hbm_to_vmem [thread:$0]  %s6, 512, %s74, [#allocation10], 64, 64, 4
    $region29: #{tpu_custom_call.1} parent=1 // pred_fallthru
      _
    // Predicated region
    $region30: #{tpu_custom_call.1} parent=1 // pred_check
      _
    $region31: #{tpu_custom_call.1} parent=1 // pred_check_branch
      %81 = sbr.rel (0) target = $region33
    $region32: #{tpu_custom_call.1} parent=1 // pred_region
      %82 = dma.done [#allocation4], 768
    $region33: #{tpu_custom_call.1} parent=1 // pred_fallthru
      _
    // Predicated region
    $region34: #{tpu_custom_call.1} parent=1 // pred_check
      _
    $region35: #{tpu_custom_call.1} parent=1 // pred_check_branch
      %84 = sbr.rel (0) target = $region37
    $region36: #{tpu_custom_call.1} parent=1 // pred_region
      %85 = dma.done [#allocation7], 1536
    $region37: #{tpu_custom_call.1} parent=1 // pred_fallthru
      _
    // Predicated region
    $region38: #{tpu_custom_call.1} parent=1 // pred_check
      _
    $region39: #{tpu_custom_call.1} parent=1 // pred_check_branch
      %87 = sbr.rel (0) target = $region41
    $region40: #{tpu_custom_call.1} parent=1 // pred_region
      %88 = dma.done [#allocation7], 3072
    $region41: #{tpu_custom_call.1} parent=1 // pred_fallthru
      _
    // Predicated region
    $region42: #{tpu_custom_call.1} parent=1 // pred_check
      _
    $region43: #{tpu_custom_call.1} parent=1 // pred_check_branch
      %90 = sbr.rel (0) target = $region45
    $region44: #{tpu_custom_call.1} parent=1 // pred_region
      %91 = dma.done [#allocation10], 256
    $region45: #{tpu_custom_call.1} parent=1 // pred_fallthru
      _
    // Predicated region
    $region46: #{tpu_custom_call.1} parent=1 // pred_check
      _
    $region47: #{tpu_custom_call.1} parent=1 // pred_check_branch
      %93 = sbr.rel (0) target = $region49
    $region48: #{tpu_custom_call.1} parent=1 // pred_region
      %94 = dma.done [#allocation10], 512
    $region49: #{tpu_custom_call.1} parent=1 // pred_fallthru
      _
    %v96 = vlaneseq
    %v97 = vshrl.u32 %v96, 7
    %v98 = vadd.s32 %v97, 8
    %v99 = vadd.s32 %v97, 16
    %v100 = vadd.s32 %v97, 24
    %vm101 = vcmp.lt.s32.totalorder %v97, 0
    %v102 = vsub.s32 0, %v97
    %v103 = vsel %vm101, %v102, %v97
    %v104 = vshrl.u32 %v103, 4
    %v105 = vand.u32 %v103, 15
    %v106 = vsub.s32 0, %v105
    %v107 = vsel %vm101, %v106, %v105
    %vm108 = vcmp.lt.s32.totalorder %v98, 0
    %v109 = vsub.s32 0, %v98
    %v110 = vsel %vm108, %v109, %v98
    %v111 = vshrl.u32 %v110, 4
    %v112 = vand.u32 %v110, 15
    %v113 = vsub.s32 0, %v112
    %v114 = vsel %vm108, %v113, %v112
    %vm115 = vcmp.lt.s32.totalorder %v99, 0
    %v116 = vsub.s32 0, %v99
    %v117 = vsel %vm115, %v116, %v99
    %v118 = vshrl.u32 %v117, 4
    %v119 = vand.u32 %v117, 15
    %v120 = vsub.s32 0, %v119
    %v121 = vsel %vm115, %v120, %v119
    %vm122 = vcmp.lt.s32.totalorder %v100, 0
    %v123 = vsub.s32 0, %v100
    %v124 = vsel %vm122, %v123, %v100
    %v125 = vshrl.u32 %v124, 4
    %v126 = vand.u32 %v124, 15
    %v127 = vsub.s32 0, %v126
    %v128 = vsel %vm122, %v127, %v126
    %vm129 = vcmp.ne.s32.totalorder %v107, 0
    %vm130 = vcmp.ne.s32.totalorder %v114, 0
    %vm131 = vcmp.ne.s32.totalorder %v121, 0
    %vm132 = vcmp.ne.s32.totalorder %v128, 0
    %vm133 = vcmp.lt.s32.totalorder %v107, 0
    %vm134 = vcmp.lt.s32.totalorder %v114, 0
    %vm135 = vcmp.lt.s32.totalorder %v121, 0
    %vm136 = vcmp.lt.s32.totalorder %v128, 0
    %vm137 = vmand %vm133, %vm129
    %vm138 = vmand %vm134, %vm130
    %vm139 = vmand %vm135, %vm131
    %vm140 = vmand %vm136, %vm132
    %v141 = vadd.s32 %v107, 16
    %v142 = vadd.s32 %v114, 16
    %v143 = vadd.s32 %v121, 16
    %v144 = vadd.s32 %v128, 16
    %v145 = vsel %vm137, %v141, %v107
    %v146 = vsel %vm138, %v142, %v114
    %v147 = vsel %vm139, %v143, %v121
    %v148 = vsel %vm140, %v144, %v128
    %vm149 = vcmp.gt.s32.totalorder %v145, 0
    %vm150 = vcmp.gt.s32.totalorder %v146, 0
    %vm151 = vcmp.gt.s32.totalorder %v147, 0
    %vm152 = vcmp.gt.s32.totalorder %v148, 0
    %vm153 = vcmp.lt.s32.totalorder %v145, 15
    %vm154 = vcmp.lt.s32.totalorder %v146, 15
    %vm155 = vcmp.lt.s32.totalorder %v147, 15
    %vm156 = vcmp.lt.s32.totalorder %v148, 15
    %v157 = vld [vmem:[%s5] sm:$0x1]
    %v158 = vld [vmem:[%s5 + $0x1] sm:$0x1]
    %v159 = vld [vmem:[%s5 + $0x2] sm:$0x1]
    %v160 = vld [vmem:[%s5 + $0x3] sm:$0x1]
    %v161 = vld [vmem:[%s5 + $0x4] sm:$0x1]
    %v162 = vld [vmem:[#allocation3 + $0x7] sm:$0xff]
    %v163 = vld [vmem:[#allocation3 + $0xf] sm:$0xff]
    %v164 = vld [vmem:[#allocation3 + $0x17] sm:$0xff]
    %v165 = vld [vmem:[#allocation3 + $0x1f] sm:$0xff]
    %v166 = vsel %vm149, 1, 0
    %v167 = vsel %vm150, 1, 0
    %v168 = vsel %vm151, 1, 0
    %v169 = vsel %vm152, 1, 0
    %vm170 = vcmp.eq.s32.totalorder %v166, 1
    %vm171 = vcmp.eq.s32.totalorder %v167, 1
    %vm172 = vcmp.eq.s32.totalorder %v168, 1
    %vm173 = vcmp.eq.s32.totalorder %v169, 1
    %v174 = vsel %vm170, %v162, 0.0
    %v175 = vsel %vm171, %v163, 0.0
    %v176 = vsel %vm172, %v164, 0.0
    %v177 = vsel %vm173, %v165, 0.0
    %v178 = vld [vmem:[#allocation3 + $0x8] sm:$0xff]
    %v179 = vld [vmem:[#allocation3 + $0x10] sm:$0xff]
    %v180 = vld [vmem:[#allocation3 + $0x18] sm:$0xff]
    %v181 = vld [vmem:[#allocation3 + $0x20] sm:$0xff]
    %v182 = vld [vmem:[#allocation3 + $0x9] sm:$0xff]
    %v183 = vld [vmem:[#allocation3 + $0x11] sm:$0xff]
    %v184 = vld [vmem:[#allocation3 + $0x19] sm:$0xff]
    %v185 = vld [vmem:[#allocation3 + $0x21] sm:$0xff]
    %v186 = vsel %vm153, 1, 0
    %v187 = vsel %vm154, 1, 0
    %v188 = vsel %vm155, 1, 0
    %v189 = vsel %vm156, 1, 0
    %vm190 = vcmp.eq.s32.totalorder %v186, 1
    %vm191 = vcmp.eq.s32.totalorder %v187, 1
    %vm192 = vcmp.eq.s32.totalorder %v188, 1
    %vm193 = vcmp.eq.s32.totalorder %v189, 1
    %v194 = vsel %vm190, %v182, 0.0
    %v195 = vsel %vm191, %v183, 0.0
    %v196 = vsel %vm192, %v184, 0.0
    %v197 = vsel %vm193, %v185, 0.0
    %v198 = vpack.c.bf16 %v175, %v174
    %v199 = vpack.c.bf16 %v177, %v176
    %v200 = vld [vmem:[#allocation6] sm:$0xf]
    %v201 = vld [vmem:[#allocation6 + $0x4] sm:$0xf]
    %v202 = vld [vmem:[#allocation6 + $0x8] sm:$0xf]
    %v203 = vld [vmem:[#allocation6 + $0xc] sm:$0xf]
    %v204 = vld [vmem:[#allocation6 + $0x10] sm:$0xf]
    %v205 = vld [vmem:[#allocation6 + $0x14] sm:$0xf]
    %v206 = vld [vmem:[#allocation6 + $0x18] sm:$0xf]
    %v207 = vld [vmem:[#allocation6 + $0x1c] sm:$0xf]
    %v208 = vpack.c.bf16 %v179, %v178
    %v209 = vpack.c.bf16 %v181, %v180
    %s210 = scalar_lea.vmem [#allocation6], 32
    %v211 = vld [vmem:[%s210] sm:$0xf]
    %v212 = vld [vmem:[%s210 + $0x4] sm:$0xf]
    %v213 = vld [vmem:[%s210 + $0x8] sm:$0xf]
    %v214 = vld [vmem:[%s210 + $0xc] sm:$0xf]
    %v215 = vld [vmem:[%s210 + $0x10] sm:$0xf]
    %v216 = vld [vmem:[%s210 + $0x14] sm:$0xf]
    %v217 = vld [vmem:[%s210 + $0x18] sm:$0xf]
    %v218 = vld [vmem:[%s210 + $0x1c] sm:$0xf]
    %v227 = vunpack.c.l.b16 %v211
    %v228 = vunpack.c.l.b16 %v212
    %v229 = vunpack.c.l.b16 %v213
    %v230 = vunpack.c.l.b16 %v214
    %v231 = vunpack.c.l.b16 %v215
    %v232 = vunpack.c.l.b16 %v216
    %v233 = vunpack.c.l.b16 %v217
    %v234 = vunpack.c.l.b16 %v218
    %v235 = vpack.c.b16 %v228, %v227
    %v236 = vpack.c.b16 %v230, %v229
    %v237 = vpack.c.b16 %v232, %v231
    %v238 = vpack.c.b16 %v234, %v233
    %vm243 = vcmask 523264
    %v245 = vsel %vm243, %v208, 0
    %v248 = vsel %vm243, %v209, 0
    %250 = vmatprep.subr.bf16.mxu0 0
    %251 = vmatpush1.bf16.msra.mxu0 %v235
    %252 = vmatprep.subr.bf16.mxu0 0
    %253 = vmatpush1.bf16.msra.mxu0 %v236
    %254 = vmatprep.subr.bf16.mxu0 0
    %255 = vmatpush1.bf16.msra.mxu0 %v237
    %256 = vmatprep.subr.bf16.mxu0 0
    %257 = vmatpush1.bf16.msra.mxu0 %v238
    %258 = vmatprep.subr.bf16.mxu0 0
    %259 = vmatpush1.bf16.msra.mxu0 0
    %260 = vmatprep.subr.bf16.mxu0 0
    %261 = vmatpush1.bf16.msra.mxu0 0
    %262 = vmatprep.subr.bf16.mxu0 0
    %263 = vmatpush1.bf16.msra.mxu0 0
    %264 = vmatprep.subr.bf16.mxu0 0
    %265 = vmatpush1.bf16.msra.mxu0 0
    %266 = vmatprep.subr.bf16.mxu0 0
    %267 = vmatpush1.bf16.msra.mxu0 0
    %268 = vmatprep.subr.bf16.mxu0 0
    %269 = vmatpush1.bf16.msra.mxu0 0
    %270 = vmatprep.subr.bf16.mxu0 0
    %271 = vmatpush1.bf16.msra.mxu0 0
    %272 = vmatprep.subr.bf16.mxu0 0
    %273 = vmatpush1.bf16.msra.mxu0 0
    %274 = vmatprep.subr.bf16.mxu0 0
    %275 = vmatpush1.bf16.msra.mxu0 0
    %276 = vmatprep.subr.bf16.mxu0 0
    %277 = vmatpush1.bf16.msra.mxu0 0
    %278 = vmatprep.subr.bf16.mxu0 0
    %279 = vmatpush1.bf16.msra.mxu0 0
    %280 = vmatprep.subr.bf16.mxu0 0
    %281 = vmatpush1.bf16.msra.mxu0 0
    %282 = vmatprep.mubr.bf16.mxu0 0
    %283 = vmatmul.mubr.bf16.gmra.mrb[0].mxu0 %v245
    %v284 = vpop.f32.mrb[0].mxu0
    %v285 = vadd.f32 0.0, %v284
    %v286 = vpop.f32.mrb[0].mxu0
    %v287 = vpop.f32.mrb[0].mxu0
    %v288 = vadd.f32 0.0, %v287
    %v289 = vpop.f32.mrb[0].mxu0
    %290 = vmatprep.mubr.bf16.mxu0 0
    %291 = vmatmul.mubr.bf16.gmra.mrb[0].mxu0 %v248
    %v292 = vpop.f32.mrb[0].mxu0
    %v293 = vadd.f32 0.0, %v292
    %v294 = vpop.f32.mrb[0].mxu0
    %v295 = vpop.f32.mrb[0].mxu0
    %v296 = vadd.f32 0.0, %v295
    %v297 = vpop.f32.mrb[0].mxu0
    %298 = vdwg.mxu0
    %v307 = vunpack.c.l.b16 %v200
    %v308 = vunpack.c.l.b16 %v201
    %v309 = vunpack.c.l.b16 %v202
    %v310 = vunpack.c.l.b16 %v203
    %v311 = vunpack.c.l.b16 %v204
    %v312 = vunpack.c.l.b16 %v205
    %v313 = vunpack.c.l.b16 %v206
    %v314 = vunpack.c.l.b16 %v207
    %v315 = vpack.c.b16 %v308, %v307
    %v316 = vpack.c.b16 %v310, %v309
    %v317 = vpack.c.b16 %v312, %v311
    %v318 = vpack.c.b16 %v314, %v313
    %v324 = vsel %vm243, %v198, 0
    %v327 = vsel %vm243, %v199, 0
    %329 = vmatprep.subr.bf16.mxu0 0
    %330 = vmatpush1.bf16.msra.mxu0 %v315
    %331 = vmatprep.subr.bf16.mxu0 0
    %332 = vmatpush1.bf16.msra.mxu0 %v316
    %333 = vmatprep.subr.bf16.mxu0 0
    %334 = vmatpush1.bf16.msra.mxu0 %v317
    %335 = vmatprep.subr.bf16.mxu0 0
    %336 = vmatpush1.bf16.msra.mxu0 %v318
    %337 = vmatprep.subr.bf16.mxu0 0
    %338 = vmatpush1.bf16.msra.mxu0 0
    %339 = vmatprep.subr.bf16.mxu0 0
    %340 = vmatpush1.bf16.msra.mxu0 0
    %341 = vmatprep.subr.bf16.mxu0 0
    %342 = vmatpush1.bf16.msra.mxu0 0
    %343 = vmatprep.subr.bf16.mxu0 0
    %344 = vmatpush1.bf16.msra.mxu0 0
    %345 = vmatprep.subr.bf16.mxu0 0
    %346 = vmatpush1.bf16.msra.mxu0 0
    %347 = vmatprep.subr.bf16.mxu0 0
    %348 = vmatpush1.bf16.msra.mxu0 0
    %349 = vmatprep.subr.bf16.mxu0 0
    %350 = vmatpush1.bf16.msra.mxu0 0
    %351 = vmatprep.subr.bf16.mxu0 0
    %352 = vmatpush1.bf16.msra.mxu0 0
    %353 = vmatprep.subr.bf16.mxu0 0
    %354 = vmatpush1.bf16.msra.mxu0 0
    %355 = vmatprep.subr.bf16.mxu0 0
    %356 = vmatpush1.bf16.msra.mxu0 0
    %357 = vmatprep.subr.bf16.mxu0 0
    %358 = vmatpush1.bf16.msra.mxu0 0
    %359 = vmatprep.subr.bf16.mxu0 0
    %360 = vmatpush1.bf16.msra.mxu0 0
    %361 = vmatprep.mubr.bf16.mxu0 0
    %362 = vmatmul.mubr.bf16.gmra.mrb[0].mxu0 %v324
    %v363 = vpop.f32.mrb[0].mxu0
    %v364 = vadd.f32 %v285, %v363
    %v365 = vpop.f32.mrb[0].mxu0
    %v366 = vpop.f32.mrb[0].mxu0
    %v367 = vadd.f32 %v288, %v366
    %v368 = vpop.f32.mrb[0].mxu0
    %369 = vmatprep.mubr.bf16.mxu0 0
    %370 = vmatmul.mubr.bf16.gmra.mrb[0].mxu0 %v327
    %v371 = vpop.f32.mrb[0].mxu0
    %v372 = vadd.f32 %v293, %v371
    %v373 = vpop.f32.mrb[0].mxu0
    %v374 = vpop.f32.mrb[0].mxu0
    %v375 = vadd.f32 %v296, %v374
    %v376 = vpop.f32.mrb[0].mxu0
    %377 = vdwg.mxu0
    %v378 = vpack.c.bf16 %v195, %v194
    %v379 = vpack.c.bf16 %v197, %v196
    %s380 = scalar_lea.vmem [#allocation6], 64
    %v381 = vld [vmem:[%s380] sm:$0xf]
    %v382 = vld [vmem:[%s380 + $0x4] sm:$0xf]
    %v383 = vld [vmem:[%s380 + $0x8] sm:$0xf]
    %v384 = vld [vmem:[%s380 + $0xc] sm:$0xf]
    %v385 = vld [vmem:[%s380 + $0x10] sm:$0xf]
    %v386 = vld [vmem:[%s380 + $0x14] sm:$0xf]
    %v387 = vld [vmem:[%s380 + $0x18] sm:$0xf]
    %v388 = vld [vmem:[%s380 + $0x1c] sm:$0xf]
    %v397 = vunpack.c.l.b16 %v381
    %v398 = vunpack.c.l.b16 %v382
    %v399 = vunpack.c.l.b16 %v383
    %v400 = vunpack.c.l.b16 %v384
    %v401 = vunpack.c.l.b16 %v385
    %v402 = vunpack.c.l.b16 %v386
    %v403 = vunpack.c.l.b16 %v387
    %v404 = vunpack.c.l.b16 %v388
    %v405 = vpack.c.b16 %v398, %v397
    %v406 = vpack.c.b16 %v400, %v399
    %v407 = vpack.c.b16 %v402, %v401
    %v408 = vpack.c.b16 %v404, %v403
    %v414 = vsel %vm243, %v378, 0
    %v417 = vsel %vm243, %v379, 0
    %419 = vmatprep.subr.bf16.mxu0 0
    %420 = vmatpush1.bf16.msra.mxu0 %v405
    %421 = vmatprep.subr.bf16.mxu0 0
    %422 = vmatpush1.bf16.msra.mxu0 %v406
    %423 = vmatprep.subr.bf16.mxu0 0
    %424 = vmatpush1.bf16.msra.mxu0 %v407
    %425 = vmatprep.subr.bf16.mxu0 0
    %426 = vmatpush1.bf16.msra.mxu0 %v408
    %427 = vmatprep.subr.bf16.mxu0 0
    %428 = vmatpush1.bf16.msra.mxu0 0
    %429 = vmatprep.subr.bf16.mxu0 0
    %430 = vmatpush1.bf16.msra.mxu0 0
    %431 = vmatprep.subr.bf16.mxu0 0
    %432 = vmatpush1.bf16.msra.mxu0 0
    %433 = vmatprep.subr.bf16.mxu0 0
    %434 = vmatpush1.bf16.msra.mxu0 0
    %435 = vmatprep.subr.bf16.mxu0 0
    %436 = vmatpush1.bf16.msra.mxu0 0
    %437 = vmatprep.subr.bf16.mxu0 0
    %438 = vmatpush1.bf16.msra.mxu0 0
    %439 = vmatprep.subr.bf16.mxu0 0
    %440 = vmatpush1.bf16.msra.mxu0 0
    %441 = vmatprep.subr.bf16.mxu0 0
    %442 = vmatpush1.bf16.msra.mxu0 0
    %443 = vmatprep.subr.bf16.mxu0 0
    %444 = vmatpush1.bf16.msra.mxu0 0
    %445 = vmatprep.subr.bf16.mxu0 0
    %446 = vmatpush1.bf16.msra.mxu0 0
    %447 = vmatprep.subr.bf16.mxu0 0
    %448 = vmatpush1.bf16.msra.mxu0 0
    %449 = vmatprep.subr.bf16.mxu0 0
    %450 = vmatpush1.bf16.msra.mxu0 0
    %451 = vmatprep.mubr.bf16.mxu0 0
    %452 = vmatmul.mubr.bf16.gmra.mrb[0].mxu0 %v414
    %v453 = vpop.f32.mrb[0].mxu0
    %v454 = vadd.f32 0.0, %v453
    %v455 = vpop.f32.mrb[0].mxu0
    %v456 = vpop.f32.mrb[0].mxu0
    %v457 = vadd.f32 0.0, %v456
    %v458 = vpop.f32.mrb[0].mxu0
    %459 = vmatprep.mubr.bf16.mxu0 0
    %460 = vmatmul.mubr.bf16.gmra.mrb[0].mxu0 %v417
    %v461 = vpop.f32.mrb[0].mxu0
    %v462 = vadd.f32 0.0, %v461
    %v463 = vpop.f32.mrb[0].mxu0
    %v464 = vpop.f32.mrb[0].mxu0
    %v465 = vadd.f32 0.0, %v464
    %v466 = vpop.f32.mrb[0].mxu0
    %467 = vdwg.mxu0
    %v468 = vadd.f32 %v364, %v454
    %v469 = vadd.f32 %v367, %v457
    %v470 = vadd.f32 %v372, %v462
    %v471 = vadd.f32 %v375, %v465
    %v472 = vadd.f32 %v468, %v469
    %v473 = vadd.f32 %v472, %v470
    %v474 = vadd.f32 %v473, %v471
    %v475 = vrot.slane %v474, 4
    %v476 = vadd.f32 %v474, %v475
    %v477 = vrot.slane %v476, 2
    %v478 = vadd.f32 %v476, %v477
    %v479 = vrot.slane %v478, 1
    %v480 = vadd.f32 %v478, %v479
    %481 = vrot.lane.b32.xlu0 %v480, 8
    %v482 = vpop.permute.xlu0 %481
    %v483 = vadd.f32 %v480, %v482
    %484 = vrot.lane.b32.xlu0 %v483, 16
    %v485 = vpop.permute.xlu0 %484
    %v486 = vadd.f32 %v483, %v485
    %487 = vrot.lane.b32.xlu0 %v486, 32
    %v488 = vpop.permute.xlu0 %487
    %v489 = vadd.f32 %v486, %v488
    %490 = vrot.lane.b32.xlu0 %v489, 64
    %v491 = vpop.permute.xlu0 %490
    %v492 = vadd.f32 %v489, %v491
    %v493 = vmul.f32 %v492, 0.001953125
    %v494 = vlaneseq
    %v495 = vshrl.u32 %v494, 7
    %v496 = vsub.s32 0, %v495
    %v497 = vrot.slane %v493, %v496
    %v498 = vsub.f32 %v468, %v497
    %v499 = vsub.f32 %v469, %v497
    %v500 = vsub.f32 %v470, %v497
    %v501 = vsub.f32 %v471, %v497
    %v502 = vmul.f32 %v498, %v498
    %v503 = vmul.f32 %v499, %v499
    %v504 = vmul.f32 %v500, %v500
    %v505 = vmul.f32 %v501, %v501
    %v506 = vadd.f32 %v502, %v503
    %v507 = vadd.f32 %v506, %v504
    %v508 = vadd.f32 %v507, %v505
    %v509 = vrot.slane %v508, 4
    %v510 = vadd.f32 %v508, %v509
    %v511 = vrot.slane %v510, 2
    %v512 = vadd.f32 %v510, %v511
    %v513 = vrot.slane %v512, 1
    %v514 = vadd.f32 %v512, %v513
    %515 = vrot.lane.b32.xlu0 %v514, 8
    %v516 = vpop.permute.xlu0 %515
    %v517 = vadd.f32 %v514, %v516
    %518 = vrot.lane.b32.xlu0 %v517, 16
    %v519 = vpop.permute.xlu0 %518
    %v520 = vadd.f32 %v517, %v519
    %521 = vrot.lane.b32.xlu0 %v520, 32
    %v522 = vpop.permute.xlu0 %521
    %v523 = vadd.f32 %v520, %v522
    %524 = vrot.lane.b32.xlu0 %v523, 64
    %v525 = vpop.permute.xlu0 %524
    %v526 = vadd.f32 %v523, %v525
    %v527 = vmul.f32 %v526, 0.001953125
    %v528 = vadd.f32 %v527, 1e-05
    %v529 = vrsqrt.pop %v528
    %v530 = vmul.f32 %v157, %v529
    %v531 = vlaneseq
    %v532 = vshrl.u32 %v531, 7
    %v533 = vsub.s32 0, %v532
    %v534 = vrot.slane %v530, %v533
    %v535 = vmul.f32 %v498, %v534
    %v536 = vmul.f32 %v499, %v534
    %v537 = vmul.f32 %v500, %v534
    %v538 = vmul.f32 %v501, %v534
    %v539 = vlaneseq
    %v540 = vshrl.u32 %v539, 7
    %v541 = vsub.s32 0, %v540
    %v542 = vrot.slane %v158, %v541
    %v543 = vadd.f32 %v535, %v542
    %v544 = vadd.f32 %v536, %v542
    %v545 = vadd.f32 %v537, %v542
    %v546 = vadd.f32 %v538, %v542
    %v547 = vmax.f32 %v543, 0.0
    %v548 = vmax.f32 %v544, 0.0
    %v549 = vmax.f32 %v545, 0.0
    %v550 = vmax.f32 %v546, 0.0
    %v551 = vld [vmem:[%s4] sm:$0x1]
    %v552 = vld [vmem:[#allocation9] sm:$0xf]
    %v553 = vld [vmem:[#allocation9 + $0x4] sm:$0xf]
    %v554 = vld [vmem:[#allocation9 + $0x8] sm:$0xf]
    %v555 = vld [vmem:[#allocation9 + $0xc] sm:$0xf]
    %v556 = vlaneseq
    %v557 = vshrl.u32 %v556, 7
    %v558 = vsub.s32 0, %v557
    %v559 = vrot.slane %v161, %v558
    %v564 = vunpack.c.l.b16 %v552
    %v565 = vunpack.c.l.b16 %v553
    %v566 = vunpack.c.l.b16 %v554
    %v567 = vunpack.c.l.b16 %v555
    %v568 = vpack.c.b16 %v565, %v564
    %v569 = vpack.c.b16 %v567, %v566
    %vm572 = vcmask 261120
    %v574 = vsel %vm572, %v551, 0
    %576 = vmatprep.subr.bf16.mxu0 0
    %577 = vmatpush1.bf16.msra.mxu0 %v568
    %578 = vmatprep.subr.bf16.mxu0 0
    %579 = vmatpush1.bf16.msra.mxu0 %v569
    %580 = vmatprep.subr.bf16.mxu0 0
    %581 = vmatpush1.bf16.msra.mxu0 0
    %582 = vmatprep.subr.bf16.mxu0 0
    %583 = vmatpush1.bf16.msra.mxu0 0
    %584 = vmatprep.subr.bf16.mxu0 0
    %585 = vmatpush1.bf16.msra.mxu0 0
    %586 = vmatprep.subr.bf16.mxu0 0
    %587 = vmatpush1.bf16.msra.mxu0 0
    %588 = vmatprep.subr.bf16.mxu0 0
    %589 = vmatpush1.bf16.msra.mxu0 0
    %590 = vmatprep.subr.bf16.mxu0 0
    %591 = vmatpush1.bf16.msra.mxu0 0
    %592 = vmatprep.subr.bf16.mxu0 0
    %593 = vmatpush1.bf16.msra.mxu0 0
    %594 = vmatprep.subr.bf16.mxu0 0
    %595 = vmatpush1.bf16.msra.mxu0 0
    %596 = vmatprep.subr.bf16.mxu0 0
    %597 = vmatpush1.bf16.msra.mxu0 0
    %598 = vmatprep.subr.bf16.mxu0 0
    %599 = vmatpush1.bf16.msra.mxu0 0
    %600 = vmatprep.subr.bf16.mxu0 0
    %601 = vmatpush1.bf16.msra.mxu0 0
    %602 = vmatprep.subr.bf16.mxu0 0
    %603 = vmatpush1.bf16.msra.mxu0 0
    %604 = vmatprep.subr.bf16.mxu0 0
    %605 = vmatpush1.bf16.msra.mxu0 0
    %606 = vmatprep.subr.bf16.mxu0 0
    %607 = vmatpush1.bf16.msra.mxu0 0
    %608 = vmatprep.mubr.bf16.mxu0 0
    %609 = vmatmul.mubr.bf16.gmra.mrb[0].mxu0 %v574
    %v610 = vpop.f32.mrb[0].mxu0
    %v611 = vadd.f32 %v559, %v610
    %v612 = vpop.f32.mrb[0].mxu0
    %v613 = vpop.f32.mrb[0].mxu0
    %v614 = vpop.f32.mrb[0].mxu0
    %615 = vdwg.mxu0
    %v616 = vlaneseq
    %v617 = vshrl.u32 %v616, 7
    %v618 = vsub.s32 0, %v617
    %v619 = vrot.slane %v611, %v618
    %v620 = vadd.f32 %v547, %v619
    %v621 = vadd.f32 %v548, %v619
    %622 = vst [vmem:[#allocation2 + $0x8] sm:$0xff] %v620
    %623 = vst [vmem:[#allocation2 + $0x10] sm:$0xff] %v621
    %v624 = vlaneseq
    %v625 = vshrl.u32 %v624, 7
    %v626 = vsub.s32 1, %v625
    %v627 = vrot.slane %v611, %v626
    %v628 = vadd.f32 %v549, %v627
    %v629 = vadd.f32 %v550, %v627
    %630 = vst [vmem:[#allocation2 + $0x18] sm:$0xff] %v628
    %631 = vst [vmem:[#allocation2 + $0x20] sm:$0xff] %v629
    %v632 = vld [vmem:[#allocation2 + $0x7] sm:$0xff]
    %v633 = vld [vmem:[#allocation2 + $0xf] sm:$0xff]
    %v634 = vld [vmem:[#allocation2 + $0x17] sm:$0xff]
    %v635 = vld [vmem:[#allocation2 + $0x1f] sm:$0xff]
    %v636 = vsel %vm170, %v632, 0.0
    %v637 = vsel %vm171, %v633, 0.0
    %v638 = vsel %vm172, %v634, 0.0
    %v639 = vsel %vm173, %v635, 0.0
    %v640 = vld [vmem:[#allocation2 + $0x8] sm:$0xff]
    %v641 = vld [vmem:[#allocation2 + $0x10] sm:$0xff]
    %v642 = vld [vmem:[#allocation2 + $0x18] sm:$0xff]
    %v643 = vld [vmem:[#allocation2 + $0x20] sm:$0xff]
    %v644 = vld [vmem:[#allocation2 + $0x9] sm:$0xff]
    %v645 = vld [vmem:[#allocation2 + $0x11] sm:$0xff]
    %v646 = vld [vmem:[#allocation2 + $0x19] sm:$0xff]
    %v647 = vld [vmem:[#allocation2 + $0x21] sm:$0xff]
    %v648 = vsel %vm190, %v644, 0.0
    %v649 = vsel %vm191, %v645, 0.0
    %v650 = vsel %vm192, %v646, 0.0
    %v651 = vsel %vm193, %v647, 0.0
    %v652 = vpack.c.bf16 %v637, %v636
    %v653 = vpack.c.bf16 %v639, %v638
    %v654 = vld [vmem:[#allocation8] sm:$0xf]
    %v655 = vld [vmem:[#allocation8 + $0x4] sm:$0xf]
    %v656 = vld [vmem:[#allocation8 + $0x8] sm:$0xf]
    %v657 = vld [vmem:[#allocation8 + $0xc] sm:$0xf]
    %v658 = vld [vmem:[#allocation8 + $0x10] sm:$0xf]
    %v659 = vld [vmem:[#allocation8 + $0x14] sm:$0xf]
    %v660 = vld [vmem:[#allocation8 + $0x18] sm:$0xf]
    %v661 = vld [vmem:[#allocation8 + $0x1c] sm:$0xf]
    %v662 = vld [vmem:[#allocation8 + $0x20] sm:$0xf]
    %v663 = vld [vmem:[#allocation8 + $0x24] sm:$0xf]
    %v664 = vld [vmem:[#allocation8 + $0x28] sm:$0xf]
    %v665 = vld [vmem:[#allocation8 + $0x2c] sm:$0xf]
    %v666 = vld [vmem:[#allocation8 + $0x30] sm:$0xf]
    %v667 = vld [vmem:[#allocation8 + $0x34] sm:$0xf]
    %v668 = vld [vmem:[#allocation8 + $0x38] sm:$0xf]
    %v669 = vld [vmem:[#allocation8 + $0x3c] sm:$0xf]
    %v670 = vpack.c.bf16 %v641, %v640
    %v671 = vpack.c.bf16 %v643, %v642
    %s672 = scalar_lea.vmem [#allocation8], 64
    %v673 = vld [vmem:[%s672] sm:$0xf]
    %v674 = vld [vmem:[%s672 + $0x4] sm:$0xf]
    %v675 = vld [vmem:[%s672 + $0x8] sm:$0xf]
    %v676 = vld [vmem:[%s672 + $0xc] sm:$0xf]
    %v677 = vld [vmem:[%s672 + $0x10] sm:$0xf]
    %v678 = vld [vmem:[%s672 + $0x14] sm:$0xf]
    %v679 = vld [vmem:[%s672 + $0x18] sm:$0xf]
    %v680 = vld [vmem:[%s672 + $0x1c] sm:$0xf]
    %v681 = vld [vmem:[%s672 + $0x20] sm:$0xf]
    %v682 = vld [vmem:[%s672 + $0x24] sm:$0xf]
    %v683 = vld [vmem:[%s672 + $0x28] sm:$0xf]
    %v684 = vld [vmem:[%s672 + $0x2c] sm:$0xf]
    %v685 = vld [vmem:[%s672 + $0x30] sm:$0xf]
    %v686 = vld [vmem:[%s672 + $0x34] sm:$0xf]
    %v687 = vld [vmem:[%s672 + $0x38] sm:$0xf]
    %v688 = vld [vmem:[%s672 + $0x3c] sm:$0xf]
    %v705 = vunpack.c.l.b16 %v673
    %v706 = vunpack.c.l.b16 %v674
    %v707 = vunpack.c.l.b16 %v675
    %v708 = vunpack.c.l.b16 %v676
    %v709 = vunpack.c.l.b16 %v677
    %v710 = vunpack.c.l.b16 %v678
    %v711 = vunpack.c.l.b16 %v679
    %v712 = vunpack.c.l.b16 %v680
    %v713 = vunpack.c.l.b16 %v681
    %v714 = vunpack.c.l.b16 %v682
    %v715 = vunpack.c.l.b16 %v683
    %v716 = vunpack.c.l.b16 %v684
    %v717 = vunpack.c.l.b16 %v685
    %v718 = vunpack.c.l.b16 %v686
    %v719 = vunpack.c.l.b16 %v687
    %v720 = vunpack.c.l.b16 %v688
    %v721 = vpack.c.b16 %v706, %v705
    %v722 = vpack.c.b16 %v708, %v707
    %v723 = vpack.c.b16 %v710, %v709
    %v724 = vpack.c.b16 %v712, %v711
    %v725 = vpack.c.b16 %v714, %v713
    %v726 = vpack.c.b16 %v716, %v715
    %v727 = vpack.c.b16 %v718, %v717
    %v728 = vpack.c.b16 %v720, %v719
    %737 = vmatprep.subr.bf16.mxu0 0
    %738 = vmatpush1.bf16.msra.mxu0 %v721
    %739 = vmatprep.subr.bf16.mxu0 0
    %740 = vmatpush1.bf16.msra.mxu0 %v722
    %741 = vmatprep.subr.bf16.mxu0 0
    %742 = vmatpush1.bf16.msra.mxu0 %v723
    %743 = vmatprep.subr.bf16.mxu0 0
    %744 = vmatpush1.bf16.msra.mxu0 %v724
    %745 = vmatprep.subr.bf16.mxu0 0
    %746 = vmatpush1.bf16.msra.mxu0 %v725
    %747 = vmatprep.subr.bf16.mxu0 0
    %748 = vmatpush1.bf16.msra.mxu0 %v726
    %749 = vmatprep.subr.bf16.mxu0 0
    %750 = vmatpush1.bf16.msra.mxu0 %v727
    %751 = vmatprep.subr.bf16.mxu0 0
    %752 = vmatpush1.bf16.msra.mxu0 %v728
    %753 = vmatprep.subr.bf16.mxu0 0
    %754 = vmatpush1.bf16.msra.mxu0 0
    %755 = vmatprep.subr.bf16.mxu0 0
    %756 = vmatpush1.bf16.msra.mxu0 0
    %757 = vmatprep.subr.bf16.mxu0 0
    %758 = vmatpush1.bf16.msra.mxu0 0
    %759 = vmatprep.subr.bf16.mxu0 0
    %760 = vmatpush1.bf16.msra.mxu0 0
    %761 = vmatprep.subr.bf16.mxu0 0
    %762 = vmatpush1.bf16.msra.mxu0 0
    %763 = vmatprep.subr.bf16.mxu0 0
    %764 = vmatpush1.bf16.msra.mxu0 0
    %765 = vmatprep.subr.bf16.mxu0 0
    %766 = vmatpush1.bf16.msra.mxu0 0
    %767 = vmatprep.subr.bf16.mxu0 0
    %768 = vmatpush1.bf16.msra.mxu0 0
    %769 = vmatprep.mubr.bf16.mxu0 0
    %770 = vmatmul.mubr.bf16.gmra.mrb[0].mxu0 %v670
    %v771 = vpop.f32.mrb[0].mxu0
    %v772 = vadd.f32 0.0, %v771
    %v773 = vpop.f32.mrb[0].mxu0
    %v774 = vpop.f32.mrb[0].mxu0
    %v775 = vadd.f32 0.0, %v774
    %v776 = vpop.f32.mrb[0].mxu0
    %777 = vmatprep.mubr.bf16.mxu0 0
    %778 = vmatmul.mubr.bf16.gmra.mrb[0].mxu0 %v671
    %v779 = vpop.f32.mrb[0].mxu0
    %v780 = vadd.f32 0.0, %v779
    %v781 = vpop.f32.mrb[0].mxu0
    %v782 = vpop.f32.mrb[0].mxu0
    %v783 = vadd.f32 0.0, %v782
    %v784 = vpop.f32.mrb[0].mxu0
    %785 = vdwg.mxu0
    %v802 = vunpack.c.l.b16 %v654
    %v803 = vunpack.c.l.b16 %v655
    %v804 = vunpack.c.l.b16 %v656
    %v805 = vunpack.c.l.b16 %v657
    %v806 = vunpack.c.l.b16 %v658
    %v807 = vunpack.c.l.b16 %v659
    %v808 = vunpack.c.l.b16 %v660
    %v809 = vunpack.c.l.b16 %v661
    %v810 = vunpack.c.l.b16 %v662
    %v811 = vunpack.c.l.b16 %v663
    %v812 = vunpack.c.l.b16 %v664
    %v813 = vunpack.c.l.b16 %v665
    %v814 = vunpack.c.l.b16 %v666
    %v815 = vunpack.c.l.b16 %v667
    %v816 = vunpack.c.l.b16 %v668
    %v817 = vunpack.c.l.b16 %v669
    %v818 = vpack.c.b16 %v803, %v802
    %v819 = vpack.c.b16 %v805, %v804
    %v820 = vpack.c.b16 %v807, %v806
    %v821 = vpack.c.b16 %v809, %v808
    %v822 = vpack.c.b16 %v811, %v810
    %v823 = vpack.c.b16 %v813, %v812
    %v824 = vpack.c.b16 %v815, %v814
    %v825 = vpack.c.b16 %v817, %v816
    %834 = vmatprep.subr.bf16.mxu0 0
    %835 = vmatpush1.bf16.msra.mxu0 %v818
    %836 = vmatprep.subr.bf16.mxu0 0
    %837 = vmatpush1.bf16.msra.mxu0 %v819
    %838 = vmatprep.subr.bf16.mxu0 0
    %839 = vmatpush1.bf16.msra.mxu0 %v820
    %840 = vmatprep.subr.bf16.mxu0 0
    %841 = vmatpush1.bf16.msra.mxu0 %v821
    %842 = vmatprep.subr.bf16.mxu0 0
    %843 = vmatpush1.bf16.msra.mxu0 %v822
    %844 = vmatprep.subr.bf16.mxu0 0
    %845 = vmatpush1.bf16.msra.mxu0 %v823
    %846 = vmatprep.subr.bf16.mxu0 0
    %847 = vmatpush1.bf16.msra.mxu0 %v824
    %848 = vmatprep.subr.bf16.mxu0 0
    %849 = vmatpush1.bf16.msra.mxu0 %v825
    %850 = vmatprep.subr.bf16.mxu0 0
    %851 = vmatpush1.bf16.msra.mxu0 0
    %852 = vmatprep.subr.bf16.mxu0 0
    %853 = vmatpush1.bf16.msra.mxu0 0
    %854 = vmatprep.subr.bf16.mxu0 0
    %855 = vmatpush1.bf16.msra.mxu0 0
    %856 = vmatprep.subr.bf16.mxu0 0
    %857 = vmatpush1.bf16.msra.mxu0 0
    %858 = vmatprep.subr.bf16.mxu0 0
    %859 = vmatpush1.bf16.msra.mxu0 0
    %860 = vmatprep.subr.bf16.mxu0 0
    %861 = vmatpush1.bf16.msra.mxu0 0
    %862 = vmatprep.subr.bf16.mxu0 0
    %863 = vmatpush1.bf16.msra.mxu0 0
    %864 = vmatprep.subr.bf16.mxu0 0
    %865 = vmatpush1.bf16.msra.mxu0 0
    %866 = vmatprep.mubr.bf16.mxu0 0
    %867 = vmatmul.mubr.bf16.gmra.mrb[0].mxu0 %v652
    %v868 = vpop.f32.mrb[0].mxu0
    %v869 = vadd.f32 %v772, %v868
    %v870 = vpop.f32.mrb[0].mxu0
    %v871 = vpop.f32.mrb[0].mxu0
    %v872 = vadd.f32 %v775, %v871
    %v873 = vpop.f32.mrb[0].mxu0
    %874 = vmatprep.mubr.bf16.mxu0 0
    %875 = vmatmul.mubr.bf16.gmra.mrb[0].mxu0 %v653
    %v876 = vpop.f32.mrb[0].mxu0
    %v877 = vadd.f32 %v780, %v876
    %v878 = vpop.f32.mrb[0].mxu0
    %v879 = vpop.f32.mrb[0].mxu0
    %v880 = vadd.f32 %v783, %v879
    %v881 = vpop.f32.mrb[0].mxu0
    %882 = vdwg.mxu0
    %v883 = vpack.c.bf16 %v649, %v648
    %v884 = vpack.c.bf16 %v651, %v650
    %s885 = scalar_lea.vmem [#allocation8], 128
    %v886 = vld [vmem:[%s885] sm:$0xf]
    %v887 = vld [vmem:[%s885 + $0x4] sm:$0xf]
    %v888 = vld [vmem:[%s885 + $0x8] sm:$0xf]
    %v889 = vld [vmem:[%s885 + $0xc] sm:$0xf]
    %v890 = vld [vmem:[%s885 + $0x10] sm:$0xf]
    %v891 = vld [vmem:[%s885 + $0x14] sm:$0xf]
    %v892 = vld [vmem:[%s885 + $0x18] sm:$0xf]
    %v893 = vld [vmem:[%s885 + $0x1c] sm:$0xf]
    %v894 = vld [vmem:[%s885 + $0x20] sm:$0xf]
    %v895 = vld [vmem:[%s885 + $0x24] sm:$0xf]
    %v896 = vld [vmem:[%s885 + $0x28] sm:$0xf]
    %v897 = vld [vmem:[%s885 + $0x2c] sm:$0xf]
    %v898 = vld [vmem:[%s885 + $0x30] sm:$0xf]
    %v899 = vld [vmem:[%s885 + $0x34] sm:$0xf]
    %v900 = vld [vmem:[%s885 + $0x38] sm:$0xf]
    %v901 = vld [vmem:[%s885 + $0x3c] sm:$0xf]
    %v918 = vunpack.c.l.b16 %v886
    %v919 = vunpack.c.l.b16 %v887
    %v920 = vunpack.c.l.b16 %v888
    %v921 = vunpack.c.l.b16 %v889
    %v922 = vunpack.c.l.b16 %v890
    %v923 = vunpack.c.l.b16 %v891
    %v924 = vunpack.c.l.b16 %v892
    %v925 = vunpack.c.l.b16 %v893
    %v926 = vunpack.c.l.b16 %v894
    %v927 = vunpack.c.l.b16 %v895
    %v928 = vunpack.c.l.b16 %v896
    %v929 = vunpack.c.l.b16 %v897
    %v930 = vunpack.c.l.b16 %v898
    %v931 = vunpack.c.l.b16 %v899
    %v932 = vunpack.c.l.b16 %v900
    %v933 = vunpack.c.l.b16 %v901
    %v934 = vpack.c.b16 %v919, %v918
    %v935 = vpack.c.b16 %v921, %v920
    %v936 = vpack.c.b16 %v923, %v922
    %v937 = vpack.c.b16 %v925, %v924
    %v938 = vpack.c.b16 %v927, %v926
    %v939 = vpack.c.b16 %v929, %v928
    %v940 = vpack.c.b16 %v931, %v930
    %v941 = vpack.c.b16 %v933, %v932
    %950 = vmatprep.subr.bf16.mxu0 0
    %951 = vmatpush1.bf16.msra.mxu0 %v934
    %952 = vmatprep.subr.bf16.mxu0 0
    %953 = vmatpush1.bf16.msra.mxu0 %v935
    %954 = vmatprep.subr.bf16.mxu0 0
    %955 = vmatpush1.bf16.msra.mxu0 %v936
    %956 = vmatprep.subr.bf16.mxu0 0
    %957 = vmatpush1.bf16.msra.mxu0 %v937
    %958 = vmatprep.subr.bf16.mxu0 0
    %959 = vmatpush1.bf16.msra.mxu0 %v938
    %960 = vmatprep.subr.bf16.mxu0 0
    %961 = vmatpush1.bf16.msra.mxu0 %v939
    %962 = vmatprep.subr.bf16.mxu0 0
    %963 = vmatpush1.bf16.msra.mxu0 %v940
    %964 = vmatprep.subr.bf16.mxu0 0
    %965 = vmatpush1.bf16.msra.mxu0 %v941
    %966 = vmatprep.subr.bf16.mxu0 0
    %967 = vmatpush1.bf16.msra.mxu0 0
    %968 = vmatprep.subr.bf16.mxu0 0
    %969 = vmatpush1.bf16.msra.mxu0 0
    %970 = vmatprep.subr.bf16.mxu0 0
    %971 = vmatpush1.bf16.msra.mxu0 0
    %972 = vmatprep.subr.bf16.mxu0 0
    %973 = vmatpush1.bf16.msra.mxu0 0
    %974 = vmatprep.subr.bf16.mxu0 0
    %975 = vmatpush1.bf16.msra.mxu0 0
    %976 = vmatprep.subr.bf16.mxu0 0
    %977 = vmatpush1.bf16.msra.mxu0 0
    %978 = vmatprep.subr.bf16.mxu0 0
    %979 = vmatpush1.bf16.msra.mxu0 0
    %980 = vmatprep.subr.bf16.mxu0 0
    %981 = vmatpush1.bf16.msra.mxu0 0
    %982 = vmatprep.mubr.bf16.mxu0 0
    %983 = vmatmul.mubr.bf16.gmra.mrb[0].mxu0 %v883
    %v984 = vpop.f32.mrb[0].mxu0
    %v985 = vadd.f32 0.0, %v984
    %v986 = vpop.f32.mrb[0].mxu0
    %v987 = vpop.f32.mrb[0].mxu0
    %v988 = vadd.f32 0.0, %v987
    %v989 = vpop.f32.mrb[0].mxu0
    %990 = vmatprep.mubr.bf16.mxu0 0
    %991 = vmatmul.mubr.bf16.gmra.mrb[0].mxu0 %v884
    %v992 = vpop.f32.mrb[0].mxu0
    %v993 = vadd.f32 0.0, %v992
    %v994 = vpop.f32.mrb[0].mxu0
    %v995 = vpop.f32.mrb[0].mxu0
    %v996 = vadd.f32 0.0, %v995
    %v997 = vpop.f32.mrb[0].mxu0
    %998 = vdwg.mxu0
    %v999 = vadd.f32 %v869, %v985
    %v1000 = vadd.f32 %v872, %v988
    %v1001 = vadd.f32 %v877, %v993
    %v1002 = vadd.f32 %v880, %v996
    %v1003 = vadd.f32 %v999, %v1000
    %v1004 = vadd.f32 %v1003, %v1001
    %v1005 = vadd.f32 %v1004, %v1002
    %v1006 = vrot.slane %v1005, 4
    %v1007 = vadd.f32 %v1005, %v1006
    %v1008 = vrot.slane %v1007, 2
    %v1009 = vadd.f32 %v1007, %v1008
    %v1010 = vrot.slane %v1009, 1
    %v1011 = vadd.f32 %v1009, %v1010
    %1012 = vrot.lane.b32.xlu0 %v1011, 8
    %v1013 = vpop.permute.xlu0 %1012
    %v1014 = vadd.f32 %v1011, %v1013
    %1015 = vrot.lane.b32.xlu0 %v1014, 16
    %v1016 = vpop.permute.xlu0 %1015
    %v1017 = vadd.f32 %v1014, %v1016
    %1018 = vrot.lane.b32.xlu0 %v1017, 32
    %v1019 = vpop.permute.xlu0 %1018
    %v1020 = vadd.f32 %v1017, %v1019
    %1021 = vrot.lane.b32.xlu0 %v1020, 64
    %v1022 = vpop.permute.xlu0 %1021
    %v1023 = vadd.f32 %v1020, %v1022
    %v1024 = vmul.f32 %v1023, 0.001953125
    %v1025 = vlaneseq
    %v1026 = vshrl.u32 %v1025, 7
    %v1027 = vsub.s32 0, %v1026
    %v1028 = vrot.slane %v1024, %v1027
    %v1029 = vsub.f32 %v999, %v1028
    %v1030 = vsub.f32 %v1000, %v1028
    %v1031 = vsub.f32 %v1001, %v1028
    %v1032 = vsub.f32 %v1002, %v1028
    %v1033 = vmul.f32 %v1029, %v1029
    %v1034 = vmul.f32 %v1030, %v1030
    %v1035 = vmul.f32 %v1031, %v1031
    %v1036 = vmul.f32 %v1032, %v1032
    %v1037 = vadd.f32 %v1033, %v1034
    %v1038 = vadd.f32 %v1037, %v1035
    %v1039 = vadd.f32 %v1038, %v1036
    %v1040 = vrot.slane %v1039, 4
    %v1041 = vadd.f32 %v1039, %v1040
    %v1042 = vrot.slane %v1041, 2
    %v1043 = vadd.f32 %v1041, %v1042
    %v1044 = vrot.slane %v1043, 1
    %v1045 = vadd.f32 %v1043, %v1044
    %1046 = vrot.lane.b32.xlu0 %v1045, 8
    %v1047 = vpop.permute.xlu0 %1046
    %v1048 = vadd.f32 %v1045, %v1047
    %1049 = vrot.lane.b32.xlu0 %v1048, 16
    %v1050 = vpop.permute.xlu0 %1049
    %v1051 = vadd.f32 %v1048, %v1050
    %1052 = vrot.lane.b32.xlu0 %v1051, 32
    %v1053 = vpop.permute.xlu0 %1052
    %v1054 = vadd.f32 %v1051, %v1053
    %1055 = vrot.lane.b32.xlu0 %v1054, 64
    %v1056 = vpop.permute.xlu0 %1055
    %v1057 = vadd.f32 %v1054, %v1056
    %v1058 = vmul.f32 %v1057, 0.001953125
    %v1059 = vadd.f32 %v1058, 1e-05
    %v1060 = vrsqrt.pop %v1059
    %v1061 = vmul.f32 %v159, %v1060
    %v1062 = vlaneseq
    %v1063 = vshrl.u32 %v1062, 7
    %v1064 = vsub.s32 0, %v1063
    %v1065 = vrot.slane %v1061, %v1064
    %v1066 = vmul.f32 %v1029, %v1065
    %v1067 = vmul.f32 %v1030, %v1065
    %v1068 = vmul.f32 %v1031, %v1065
    %v1069 = vmul.f32 %v1032, %v1065
    %v1070 = vlaneseq
    %v1071 = vshrl.u32 %v1070, 7
    %v1072 = vsub.s32 0, %v1071
    %v1073 = vrot.slane %v160, %v1072
    %v1074 = vadd.f32 %v1066, %v1073
    %v1075 = vadd.f32 %v1067, %v1073
    %v1076 = vadd.f32 %v1068, %v1073
    %v1077 = vadd.f32 %v1069, %v1073
    %v1078 = vld [vmem:[#allocation3 + $0x8] sm:$0xff]
    %v1079 = vld [vmem:[#allocation3 + $0x10] sm:$0xff]
    %v1080 = vld [vmem:[#allocation3 + $0x18] sm:$0xff]
    %v1081 = vld [vmem:[#allocation3 + $0x20] sm:$0xff]
    %v1082 = vld [vmem:[%s5 + $0x5] sm:$0x1]
    %v1083 = vpack.c.bf16 %v1079, %v1078
    %v1084 = vpack.c.bf16 %v1081, %v1080
    %v1085 = vld [vmem:[#allocation11] sm:$0xf]
    %v1086 = vld [vmem:[#allocation11 + $0x4] sm:$0xf]
    %v1087 = vld [vmem:[#allocation11 + $0x8] sm:$0xf]
    %v1088 = vld [vmem:[#allocation11 + $0xc] sm:$0xf]
    %v1089 = vld [vmem:[#allocation11 + $0x10] sm:$0xf]
    %v1090 = vld [vmem:[#allocation11 + $0x14] sm:$0xf]
    %v1091 = vld [vmem:[#allocation11 + $0x18] sm:$0xf]
    %v1092 = vld [vmem:[#allocation11 + $0x1c] sm:$0xf]
    %v1093 = vlaneseq
    %v1094 = vshrl.u32 %v1093, 7
    %v1095 = vsub.s32 0, %v1094
    %v1096 = vrot.slane %v1082, %v1095
    %v1105 = vunpack.c.l.b16 %v1085
    %v1106 = vunpack.c.l.b16 %v1086
    %v1107 = vunpack.c.l.b16 %v1087
    %v1108 = vunpack.c.l.b16 %v1088
    %v1109 = vunpack.c.l.b16 %v1089
    %v1110 = vunpack.c.l.b16 %v1090
    %v1111 = vunpack.c.l.b16 %v1091
    %v1112 = vunpack.c.l.b16 %v1092
    %v1113 = vpack.c.b16 %v1106, %v1105
    %v1114 = vpack.c.b16 %v1108, %v1107
    %v1115 = vpack.c.b16 %v1110, %v1109
    %v1116 = vpack.c.b16 %v1112, %v1111
    %v1122 = vsel %vm243, %v1083, 0
    %v1125 = vsel %vm243, %v1084, 0
    %1127 = vmatprep.subr.bf16.mxu0 0
    %1128 = vmatpush1.bf16.msra.mxu0 %v1113
    %1129 = vmatprep.subr.bf16.mxu0 0
    %1130 = vmatpush1.bf16.msra.mxu0 %v1114
    %1131 = vmatprep.subr.bf16.mxu0 0
    %1132 = vmatpush1.bf16.msra.mxu0 %v1115
    %1133 = vmatprep.subr.bf16.mxu0 0
    %1134 = vmatpush1.bf16.msra.mxu0 %v1116
    %1135 = vmatprep.subr.bf16.mxu0 0
    %1136 = vmatpush1.bf16.msra.mxu0 0
    %1137 = vmatprep.subr.bf16.mxu0 0
    %1138 = vmatpush1.bf16.msra.mxu0 0
    %1139 = vmatprep.subr.bf16.mxu0 0
    %1140 = vmatpush1.bf16.msra.mxu0 0
    %1141 = vmatprep.subr.bf16.mxu0 0
    %1142 = vmatpush1.bf16.msra.mxu0 0
    %1143 = vmatprep.subr.bf16.mxu0 0
    %1144 = vmatpush1.bf16.msra.mxu0 0
    %1145 = vmatprep.subr.bf16.mxu0 0
    %1146 = vmatpush1.bf16.msra.mxu0 0
    %1147 = vmatprep.subr.bf16.mxu0 0
    %1148 = vmatpush1.bf16.msra.mxu0 0
    %1149 = vmatprep.subr.bf16.mxu0 0
    %1150 = vmatpush1.bf16.msra.mxu0 0
    %1151 = vmatprep.subr.bf16.mxu0 0
    %1152 = vmatpush1.bf16.msra.mxu0 0
    %1153 = vmatprep.subr.bf16.mxu0 0
    %1154 = vmatpush1.bf16.msra.mxu0 0
    %1155 = vmatprep.subr.bf16.mxu0 0
    %1156 = vmatpush1.bf16.msra.mxu0 0
    %1157 = vmatprep.subr.bf16.mxu0 0
    %1158 = vmatpush1.bf16.msra.mxu0 0
    %1159 = vmatprep.mubr.bf16.mxu0 0
    %1160 = vmatmul.mubr.bf16.gmra.mrb[0].mxu0 %v1122
    %v1161 = vpop.f32.mrb[0].mxu0
    %v1162 = vadd.f32 %v1096, %v1161
    %v1163 = vpop.f32.mrb[0].mxu0
    %v1164 = vpop.f32.mrb[0].mxu0
    %v1165 = vadd.f32 %v1096, %v1164
    %v1166 = vpop.f32.mrb[0].mxu0
    %1167 = vmatprep.mubr.bf16.mxu0 0
    %1168 = vmatmul.mubr.bf16.gmra.mrb[0].mxu0 %v1125
    %v1169 = vpop.f32.mrb[0].mxu0
    %v1170 = vadd.f32 %v1096, %v1169
    %v1171 = vpop.f32.mrb[0].mxu0
    %v1172 = vpop.f32.mrb[0].mxu0
    %v1173 = vadd.f32 %v1096, %v1172
    %v1174 = vpop.f32.mrb[0].mxu0
    %1175 = vdwg.mxu0
    %v1176 = vadd.f32 %v1074, %v1162
    %v1177 = vadd.f32 %v1075, %v1165
    %v1178 = vadd.f32 %v1076, %v1170
    %v1179 = vadd.f32 %v1077, %v1173
    %v1180 = vmax.f32 %v1176, 0.0
    %v1181 = vmax.f32 %v1177, 0.0
    %v1182 = vmax.f32 %v1178, 0.0
    %v1183 = vmax.f32 %v1179, 0.0
    %1184 = vst [vmem:[#allocation12] sm:$0xff] %v1180
    %1185 = vst [vmem:[#allocation12 + $0x8] sm:$0xff] %v1181
    %1186 = vst [vmem:[#allocation12 + $0x10] sm:$0xff] %v1182
    %1187 = vst [vmem:[#allocation12 + $0x18] sm:$0xff] %v1183
    // Predicated region
    $region50: #{tpu_custom_call.1} parent=1 // pred_check
      _
    $region51: #{tpu_custom_call.1} parent=1 // pred_check_branch
      %1189 = sbr.rel (0) target = $region53
    $region52: #{tpu_custom_call.1} parent=1 // pred_region
      %s1191 = ssub.s32 512, 512
      %1192 = vsyncadd [#allocation5], %s1191
      %s1193 = sshll.u32 [#allocation12], 4
      %s1194 = int_to_ptr.vmem [resolvable:$true] %s1193
      %1199 = dma.vmem_to_hbm [thread:$0]  %s1194, 512, %s7, [#allocation5], 128, 128, 8
    $region53: #{tpu_custom_call.1} parent=1 // pred_fallthru
      _
    // Predicated region
    $region54: #{tpu_custom_call.1} parent=1 // pred_check
      _
    $region55: #{tpu_custom_call.1} parent=1 // pred_check_branch
      %1201 = sbr.rel (0) target = $region57
    $region56: #{tpu_custom_call.1} parent=1 // pred_region
      %1202 = dma.done [#allocation5], 512
    $region57: #{tpu_custom_call.1} parent=1 // pred_fallthru
      _
    %1203 = vsyncpa [#allocation4], 1
    %1204 = vsyncpa [#allocation7], 1
    %1205 = vsyncpa [#allocation10], 1
    %1206 = vsyncpa [#allocation5], 1

</llo_original>
